<compile_context>
chip_gen: v6e
topology: v6e:2x2x1
jax: 0.10.0
libtpu: 0.0.40
codegen_flags: <defaults>
</compile_context>

<pallas_src>
import jax
import jax.numpy as jnp
import numpy as np
from jax import lax
from jax.experimental import pallas as pl
from jax.experimental.pallas import tpu as pltpu

# ---- static Block configuration (small synthetic sizes) -----------------
# Block(kernel_size=3, in_size=8, expand_size=24, out_size=16,
#       nolinear=nn.ReLU, semodule=SeModule(16), stride=1)
K = 3
CIN = 8
CEXP = 24
COUT = 16
CRED = COUT // 4          # SE reduction = 4
STRIDE = 1
PAD = K // 2
N = 2
H = W = 16
HW = H * W
HO = (H + 2 * PAD - K) // STRIDE + 1
WO = (W + 2 * PAD - K) // STRIDE + 1
assert STRIDE == 1 and HO == H and WO == W  # flat-window depthwise assumes this

# zero-padded flattened image used by the depthwise conv
ROWPAD = PAD + 1                   # extra zero rows above/below (absorbs edge reads)
PADROWS = H + 2 * ROWPAD
PADLEN = PADROWS * W               # 320
# output_status requires (kernel_size==5, in_size==160, expand_size==672);
# statically False for this configuration, so only `out` is returned.


def block_kernel(x_ref, wcat_ref, wd_ref, w3t_ref, se_ref, bias_ref,
                 out_ref, pad_ref):
    x = x_ref[0]                                         # (CIN, HW) bf16

    # packed per-channel biases (BN scales already folded into the weights)
    b1 = bias_ref[:, 0:1]                                # (CEXP, 1)
    b2 = bias_ref[:, 1:2]                                # (CEXP, 1)
    b3 = bias_ref[0:COUT, 2:3]                           # (COUT, 1)
    bsc = bias_ref[0:COUT, 3:4]                          # (COUT, 1)
    bse2 = bias_ref[0:COUT, 4:5]                         # (COUT, 1)

    # ---- merged expand (1x1) + shortcut (1x1) conv: one MXU matmul ----
    ts = jnp.dot(wcat_ref[...], x, preferred_element_type=jnp.float32)
    t = jnp.maximum(ts[0:CEXP, :] + b1, 0.0)             # expand + BN + ReLU
    sc = ts[CEXP:CEXP + COUT, :] + bsc                   # shortcut + BN

    # ---- depthwise KxK, stride 1, pad K//2 (+ folded BN scale, + ReLU) ----
    # zero-padded flattened image: rows [0,ROWPAD) and [ROWPAD+H, PADROWS)
    # are zero, data rows live at [ROWPAD, ROWPAD+H).
    zstrip = jnp.zeros((CEXP, ROWPAD * W), jnp.float32)
    pad_ref[:, 0:ROWPAD * W] = zstrip
    pad_ref[:, ROWPAD * W + HW:PADLEN] = zstrip
    pad_ref[:, ROWPAD * W:ROWPAD * W + HW] = t

    wdv = wd_ref[...]                                    # (CEXP, K*K)
    col = lax.broadcasted_iota(jnp.int32, (CEXP, HW), 1) % W
    acc = jnp.zeros((CEXP, HW), jnp.float32)
    for dy in range(K):                                  # static unroll: 9 taps
        for dx in range(K):
            off_x = dx - PAD
            o = (dy - PAD + ROWPAD) * W + off_x          # flat window offset
            win = pad_ref[:, o:o + HW]                   # (CEXP, HW)
            term = win * wdv[:, dy * K + dx:dy * K + dx + 1]
            if off_x < 0:                                # left-border lanes -> 0
                term = jnp.where(col >= -off_x, term, 0.0)
            elif off_x > 0:                              # right-border lanes -> 0
                term = jnp.where(col < W - off_x, term, 0.0)
            acc = acc + term
    d = jnp.maximum(acc + b2, 0.0)                       # (CEXP, HW)

    # ---- pointwise 1x1 conv + BN (scale folded) ----
    o3 = jnp.dot(w3t_ref[...], d.astype(jnp.bfloat16),
                 preferred_element_type=jnp.float32) + b3    # (COUT, HW)

    # ---- SE: global-avg-pool -> FC+BN+ReLU -> FC+BN -> hsigmoid -> scale ----
    wse1 = se_ref[0:COUT, 0:CRED]                        # (COUT, CRED)
    wse2t = se_ref[0:COUT, CRED:2 * CRED]                # (COUT, CRED)
    bse1 = se_ref[COUT:COUT + 1, 0:CRED]                 # (1, CRED)
    pooled = jnp.mean(o3, axis=1, keepdims=True)         # (COUT, 1)
    h1 = jnp.maximum(jnp.sum(wse1 * pooled, axis=0, keepdims=True) + bse1, 0.0)
    h2 = jnp.sum(wse2t * h1, axis=1, keepdims=True) + bse2       # (COUT, 1)
    gate = jnp.clip(h2 + 3.0, 0.0, 6.0) * (1.0 / 6.0)    # hsigmoid

    out_ref[0] = o3 * gate + sc                          # (COUT, HW) lane-dense


def block_forward(x_nchw, kp):
    xr = x_nchw.reshape(N, CIN, HW).astype(jnp.bfloat16)
    whole2d = lambda n: (0, 0)
    out = pl.pallas_call(
        block_kernel,
        out_shape=jax.ShapeDtypeStruct((N, COUT, HW), jnp.float32),
        grid=(N,),
        in_specs=[
            pl.BlockSpec((1, CIN, HW), lambda n: (n, 0, 0)),
            pl.BlockSpec(kp["wcat"].shape, whole2d),
            pl.BlockSpec(kp["wd"].shape, whole2d),
            pl.BlockSpec(kp["w3t"].shape, whole2d),
            pl.BlockSpec(kp["se"].shape, whole2d),
            pl.BlockSpec(kp["bias"].shape, whole2d),
        ],
        out_specs=pl.BlockSpec((1, COUT, HW), lambda n: (n, 0, 0)),
        scratch_shapes=[pltpu.VMEM((CEXP, PADLEN), jnp.float32)],
        compiler_params=pltpu.CompilerParams(dimension_semantics=("parallel",)),
    )(xr, kp["wcat"], kp["wd"], kp["w3t"], kp["se"], kp["bias"])
    return out.reshape(N, COUT, HO, WO)


# ---------------- deterministic parameter construction -------------------
def _bn_raw(key, c):
    kg, kb, km, kv = jax.random.split(key, 4)
    gamma = jax.random.uniform(kg, (c,), jnp.float32, 0.5, 1.5)
    beta = jax.random.uniform(kb, (c,), jnp.float32, -0.1, 0.1)
    mean = jax.random.uniform(km, (c,), jnp.float32, -0.1, 0.1)
    var = jax.random.uniform(kv, (c,), jnp.float32, 0.5, 1.5)
    return gamma, beta, mean, var


def _fold_bn(gamma, beta, mean, var, eps=1e-5):
    s = gamma / jnp.sqrt(var + eps)
    b = beta - mean * s
    return s.astype(jnp.float32), b.astype(jnp.float32)


def make_raw(key):
    ks = jax.random.split(key, 12)
    raw = {}
    raw["w1"] = 0.1 * jax.random.normal(ks[0], (CIN, CEXP), jnp.float32)
    raw["wd"] = 0.1 * jax.random.normal(ks[1], (K, K, CEXP), jnp.float32)
    raw["w3"] = 0.1 * jax.random.normal(ks[2], (CEXP, COUT), jnp.float32)
    raw["wse1"] = 0.1 * jax.random.normal(ks[3], (COUT, CRED), jnp.float32)
    raw["wse2"] = 0.1 * jax.random.normal(ks[4], (CRED, COUT), jnp.float32)
    raw["wsc"] = 0.1 * jax.random.normal(ks[5], (CIN, COUT), jnp.float32)
    raw["s1"], raw["b1"] = _fold_bn(*_bn_raw(ks[6], CEXP))
    raw["s2"], raw["b2"] = _fold_bn(*_bn_raw(ks[7], CEXP))
    raw["s3"], raw["b3"] = _fold_bn(*_bn_raw(ks[8], COUT))
    raw["sse1"], raw["bse1"] = _fold_bn(*_bn_raw(ks[9], CRED))
    raw["sse2"], raw["bse2"] = _fold_bn(*_bn_raw(ks[10], COUT))
    raw["ssc"], raw["bsc"] = _fold_bn(*_bn_raw(ks[11], COUT))
    return raw


def pack_params(raw):
    # fold BN scales into weights; transpose to channels-major; pack biases.
    w1s_t = (raw["w1"] * raw["s1"][None, :]).T                 # (CEXP, CIN)
    wsc_t = (raw["wsc"] * raw["ssc"][None, :]).T               # (COUT, CIN)
    wcat = jnp.concatenate([w1s_t, wsc_t], 0).astype(jnp.bfloat16)      # (40, 8)
    wd = (raw["wd"] * raw["s2"][None, None, :]).reshape(K * K, CEXP).T  # (CEXP, 9)
    w3t = (raw["w3"] * raw["s3"][None, :]).T.astype(jnp.bfloat16)       # (COUT, CEXP)
    wse1s = raw["wse1"] * raw["sse1"][None, :]                 # (COUT, CRED)
    wse2st = (raw["wse2"] * raw["sse2"][None, :]).T            # (COUT, CRED)
    se = jnp.zeros((COUT + 1, 2 * CRED), jnp.float32)
    se = se.at[0:COUT, 0:CRED].set(wse1s)
    se = se.at[0:COUT, CRED:2 * CRED].set(wse2st)
    se = se.at[COUT, 0:CRED].set(raw["bse1"])
    bias = jnp.zeros((CEXP, 6), jnp.float32)
    bias = bias.at[:, 0].set(raw["b1"])
    bias = bias.at[:, 1].set(raw["b2"])
    bias = bias.at[0:COUT, 2].set(raw["b3"])
    bias = bias.at[0:COUT, 3].set(raw["bsc"])
    bias = bias.at[0:COUT, 4].set(raw["bse2"])
    return {"wcat": wcat, "wd": wd.astype(jnp.float32), "w3t": w3t,
            "se": se, "bias": bias}


# ---------------- pure-JAX f32 reference (for correctness check) ---------
def ref_forward(x_nchw, raw):
    x = jnp.transpose(x_nchw, (0, 2, 3, 1))                    # NCHW -> NHWC
    def bc(v):
        return v.reshape(1, 1, 1, -1)
    t = jnp.einsum('nhwc,ce->nhwe', x, raw["w1"]) * bc(raw["s1"]) + bc(raw["b1"])
    t = jnp.maximum(t, 0.0)
    d = lax.conv_general_dilated(
        t, raw["wd"].reshape(K, K, 1, CEXP), (STRIDE, STRIDE),
        [(PAD, PAD), (PAD, PAD)],
        dimension_numbers=('NHWC', 'HWIO', 'NHWC'),
        feature_group_count=CEXP)
    d = jnp.maximum(d * bc(raw["s2"]) + bc(raw["b2"]), 0.0)
    o = jnp.einsum('nhwe,eo->nhwo', d, raw["w3"]) * bc(raw["s3"]) + bc(raw["b3"])
    pooled = jnp.mean(o, axis=(1, 2))                          # (N, COUT)
    h1 = jnp.maximum(pooled @ raw["wse1"] * raw["sse1"] + raw["bse1"], 0.0)
    h2 = h1 @ raw["wse2"] * raw["sse2"] + raw["bse2"]
    gate = jnp.clip(h2 + 3.0, 0.0, 6.0) / 6.0
    o = o * gate[:, None, None, :]
    sc = jnp.einsum('nhwc,co->nhwo', x, raw["wsc"]) * bc(raw["ssc"]) + bc(raw["bsc"])
    out = o + sc
    return jnp.transpose(out, (0, 3, 1, 2))                    # NHWC -> NCHW


if __name__ == "__main__":
    key = jax.random.PRNGKey(0)
    kx, kp = jax.random.split(key)
    x = jax.random.normal(kx, (N, CIN, H, W), jnp.float32)     # NCHW input
    raw = make_raw(kp)
    params = pack_params(raw)

    out = jax.block_until_ready(block_forward(x, params))
    assert out.shape == (N, COUT, HO, WO)

    ref = ref_forward(x, raw)
    np.testing.assert_allclose(np.asarray(out), np.asarray(ref),
                               rtol=5e-2, atol=5e-2)
    print("KERNEL_OK")
</pallas_src>

<mosaic_0001>
module attributes {stable_mosaic.version = 11 : i64} {
  func.func @block_kernel(%arg0: i32, %arg1: memref<1x8x256xbf16, #tpu.memory_space<vmem>>, %arg2: memref<40x8xbf16, #tpu.memory_space<vmem>>, %arg3: memref<24x9xf32, #tpu.memory_space<vmem>>, %arg4: memref<16x24xbf16, #tpu.memory_space<vmem>>, %arg5: memref<17x8xf32, #tpu.memory_space<vmem>>, %arg6: memref<24x6xf32, #tpu.memory_space<vmem>>, %arg7: memref<1x16x256xf32, #tpu.memory_space<vmem>>, %arg8: memref<24x320xf32, #tpu.memory_space<vmem>>) attributes {dimension_semantics = [#tpu.dimension_semantics<parallel>], iteration_bounds = array<i64: 2>, scalar_prefetch = 0 : i64, scratch_operands = 1 : i64, tpu.core_type = #tpu.core_type<tc>, window_params = [{transform_indices = @transform_0, window_bounds = array<i64: 1, 8, 256>}, {pipeline_mode = #tpu.pipeline_mode<synchronous>, transform_indices = @transform_1, window_bounds = array<i64: 40, 8>}, {pipeline_mode = #tpu.pipeline_mode<synchronous>, transform_indices = @transform_2, window_bounds = array<i64: 24, 9>}, {pipeline_mode = #tpu.pipeline_mode<synchronous>, transform_indices = @transform_3, window_bounds = array<i64: 16, 24>}, {pipeline_mode = #tpu.pipeline_mode<synchronous>, transform_indices = @transform_4, window_bounds = array<i64: 17, 8>}, {pipeline_mode = #tpu.pipeline_mode<synchronous>, transform_indices = @transform_5, window_bounds = array<i64: 24, 6>}, {transform_indices = @transform_6, window_bounds = array<i64: 1, 16, 256>}]} {
    %c0 = arith.constant 0 : index
    %c0_0 = arith.constant 0 : index
    %c0_1 = arith.constant 0 : index
    %0 = vector.load %arg1[%c0, %c0_0, %c0_1] : memref<1x8x256xbf16, #tpu.memory_space<vmem>>, vector<1x8x256xbf16>
    %1 = vector.shape_cast %0 : vector<1x8x256xbf16> to vector<8x256xbf16>
    %c0_2 = arith.constant 0 : index
    %c0_3 = arith.constant 0 : index
    %2 = vector.load %arg6[%c0_2, %c0_3] : memref<24x6xf32, #tpu.memory_space<vmem>>, vector<24x1xf32>
    %c0_4 = arith.constant 0 : index
    %c1 = arith.constant 1 : index
    %3 = vector.load %arg6[%c0_4, %c1] : memref<24x6xf32, #tpu.memory_space<vmem>>, vector<24x1xf32>
    %c0_5 = arith.constant 0 : index
    %c2 = arith.constant 2 : index
    %4 = vector.load %arg6[%c0_5, %c2] : memref<24x6xf32, #tpu.memory_space<vmem>>, vector<16x1xf32>
    %c0_6 = arith.constant 0 : index
    %c3 = arith.constant 3 : index
    %5 = vector.load %arg6[%c0_6, %c3] : memref<24x6xf32, #tpu.memory_space<vmem>>, vector<16x1xf32>
    %c0_7 = arith.constant 0 : index
    %c4 = arith.constant 4 : index
    %6 = vector.load %arg6[%c0_7, %c4] : memref<24x6xf32, #tpu.memory_space<vmem>>, vector<16x1xf32>
    %c0_8 = arith.constant 0 : index
    %c0_9 = arith.constant 0 : index
    %7 = vector.load %arg2[%c0_8, %c0_9] : memref<40x8xbf16, #tpu.memory_space<vmem>>, vector<40x8xbf16>
    %cst = arith.constant dense<0.000000e+00> : vector<40x256xf32>
    %8 = tpu.matmul %7, %1, %cst {dimension_numbers = #tpu.dot_dimension_numbers<[1], [0], [0], [1], [0, 0, 1, 1], [], []>} : vector<40x8xbf16>, vector<8x256xbf16>, vector<40x256xf32> -> vector<40x256xf32>
    %9 = vector.extract_strided_slice %8 {offsets = [0, 0], sizes = [24, 256], strides = [1, 1]} : vector<40x256xf32> to vector<24x256xf32>
    %10 = vector.broadcast %2 : vector<24x1xf32> to vector<24x256xf32>
    %11 = arith.addf %9, %10 : vector<24x256xf32>
    %cst_10 = arith.constant 0.000000e+00 : f32
    %12 = vector.broadcast %cst_10 : f32 to vector<24x256xf32>
    %13 = arith.maximumf %11, %12 : vector<24x256xf32>
    %14 = vector.extract_strided_slice %8 {offsets = [24, 0], sizes = [16, 256], strides = [1, 1]} : vector<40x256xf32> to vector<16x256xf32>
    %15 = vector.broadcast %5 : vector<16x1xf32> to vector<16x256xf32>
    %16 = arith.addf %14, %15 : vector<16x256xf32>
    %cst_11 = arith.constant 0.000000e+00 : f32
    %17 = vector.broadcast %cst_11 : f32 to vector<24x32xf32>
    %c0_12 = arith.constant 0 : index
    %c0_13 = arith.constant 0 : index
    %18 = vector.load %arg8[%c0_12, %c0_13] : memref<24x320xf32, #tpu.memory_space<vmem>>, vector<24x32xf32>
    tpu.vector_store %arg8[%c0_12, %c0_13], %17 {strides = array<i32>} : memref<24x320xf32, #tpu.memory_space<vmem>>, vector<24x32xf32>,
    %c0_14 = arith.constant 0 : index
    %c288 = arith.constant 288 : index
    %19 = vector.load %arg8[%c0_14, %c288] : memref<24x320xf32, #tpu.memory_space<vmem>>, vector<24x32xf32>
    tpu.vector_store %arg8[%c0_14, %c288], %17 {strides = array<i32>} : memref<24x320xf32, #tpu.memory_space<vmem>>, vector<24x32xf32>,
    %c0_15 = arith.constant 0 : index
    %c32 = arith.constant 32 : index
    %20 = vector.load %arg8[%c0_15, %c32] : memref<24x320xf32, #tpu.memory_space<vmem>>, vector<24x256xf32>
    tpu.vector_store %arg8[%c0_15, %c32], %13 {strides = array<i32>} : memref<24x320xf32, #tpu.memory_space<vmem>>, vector<24x256xf32>,
    %c0_16 = arith.constant 0 : index
    %c0_17 = arith.constant 0 : index
    %21 = vector.load %arg3[%c0_16, %c0_17] : memref<24x9xf32, #tpu.memory_space<vmem>>, vector<24x9xf32>
    %22 = tpu.iota {dimensions = array<i32: 1>} : vector<24x256xi32>
    %c16_i32 = arith.constant 16 : i32
    %c0_i32 = arith.constant 0 : i32
    %23 = arith.cmpi eq, %c16_i32, %c0_i32 : i32
    %c1_i32 = arith.constant 1 : i32
    %24 = arith.select %23, %c1_i32, %c16_i32 : i32
    %25 = vector.broadcast %24 : i32 to vector<24x256xi32>
    %26 = arith.remsi %22, %25 : vector<24x256xi32>
    %c0_i32_18 = arith.constant 0 : i32
    %27 = vector.broadcast %c0_i32_18 : i32 to vector<24x256xi32>
    %28 = arith.cmpi ne, %26, %27 : vector<24x256xi32>
    %c0_i32_19 = arith.constant 0 : i32
    %29 = vector.broadcast %c0_i32_19 : i32 to vector<24x256xi32>
    %30 = arith.cmpi slt, %26, %29 : vector<24x256xi32>
    %c0_i32_20 = arith.constant 0 : i32
    %31 = arith.cmpi slt, %24, %c0_i32_20 : i32
    %32 = vector.broadcast %31 : i1 to vector<24x256xi1>
    %33 = vector.broadcast %32 : vector<24x256xi1> to vector<24x256xi1>
    %34 = arith.xori %30, %33 : vector<24x256xi1>
    %35 = arith.andi %34, %28 : vector<24x256xi1>
    %36 = vector.broadcast %24 : i32 to vector<24x256xi32>
    %37 = arith.addi %26, %36 : vector<24x256xi32>
    %38 = arith.select %35, %37, %26 : vector<24x256xi1>, vector<24x256xi32>
    %cst_21 = arith.constant 0.000000e+00 : f32
    %39 = vector.broadcast %cst_21 : f32 to vector<24x256xf32>
    %c0_22 = arith.constant 0 : index
    %c15 = arith.constant 15 : index
    %40 = vector.load %arg8[%c0_22, %c15] : memref<24x320xf32, #tpu.memory_space<vmem>>, vector<24x256xf32>
    %41 = vector.extract_strided_slice %21 {offsets = [0, 0], sizes = [24, 1], strides = [1, 1]} : vector<24x9xf32> to vector<24x1xf32>
    %42 = vector.broadcast %41 : vector<24x1xf32> to vector<24x256xf32>
    %43 = arith.mulf %40, %42 : vector<24x256xf32>
    %c1_i32_23 = arith.constant 1 : i32
    %44 = vector.broadcast %c1_i32_23 : i32 to vector<24x256xi32>
    %45 = arith.cmpi sge, %38, %44 : vector<24x256xi32>
    %cst_24 = arith.constant 0.000000e+00 : f32
    %46 = vector.broadcast %cst_24 : f32 to vector<24x256xf32>
    %47 = arith.select %45, %43, %46 : vector<24x256xi1>, vector<24x256xf32>
    %48 = arith.addf %39, %47 : vector<24x256xf32>
    %c0_25 = arith.constant 0 : index
    %c16 = arith.constant 16 : index
    %49 = vector.load %arg8[%c0_25, %c16] : memref<24x320xf32, #tpu.memory_space<vmem>>, vector<24x256xf32>
    %50 = vector.extract_strided_slice %21 {offsets = [0, 1], sizes = [24, 1], strides = [1, 1]} : vector<24x9xf32> to vector<24x1xf32>
    %51 = vector.broadcast %50 : vector<24x1xf32> to vector<24x256xf32>
    %52 = arith.mulf %49, %51 : vector<24x256xf32>
    %53 = arith.addf %48, %52 : vector<24x256xf32>
    %c0_26 = arith.constant 0 : index
    %c17 = arith.constant 17 : index
    %54 = vector.load %arg8[%c0_26, %c17] : memref<24x320xf32, #tpu.memory_space<vmem>>, vector<24x256xf32>
    %55 = vector.extract_strided_slice %21 {offsets = [0, 2], sizes = [24, 1], strides = [1, 1]} : vector<24x9xf32> to vector<24x1xf32>
    %56 = vector.broadcast %55 : vector<24x1xf32> to vector<24x256xf32>
    %57 = arith.mulf %54, %56 : vector<24x256xf32>
    %c15_i32 = arith.constant 15 : i32
    %58 = vector.broadcast %c15_i32 : i32 to vector<24x256xi32>
    %59 = arith.cmpi slt, %38, %58 : vector<24x256xi32>
    %cst_27 = arith.constant 0.000000e+00 : f32
    %60 = vector.broadcast %cst_27 : f32 to vector<24x256xf32>
    %61 = arith.select %59, %57, %60 : vector<24x256xi1>, vector<24x256xf32>
    %62 = arith.addf %53, %61 : vector<24x256xf32>
    %c0_28 = arith.constant 0 : index
    %c31 = arith.constant 31 : index
    %63 = vector.load %arg8[%c0_28, %c31] : memref<24x320xf32, #tpu.memory_space<vmem>>, vector<24x256xf32>
    %64 = vector.extract_strided_slice %21 {offsets = [0, 3], sizes = [24, 1], strides = [1, 1]} : vector<24x9xf32> to vector<24x1xf32>
    %65 = vector.broadcast %64 : vector<24x1xf32> to vector<24x256xf32>
    %66 = arith.mulf %63, %65 : vector<24x256xf32>
    %c1_i32_29 = arith.constant 1 : i32
    %67 = vector.broadcast %c1_i32_29 : i32 to vector<24x256xi32>
    %68 = arith.cmpi sge, %38, %67 : vector<24x256xi32>
    %cst_30 = arith.constant 0.000000e+00 : f32
    %69 = vector.broadcast %cst_30 : f32 to vector<24x256xf32>
    %70 = arith.select %68, %66, %69 : vector<24x256xi1>, vector<24x256xf32>
    %71 = arith.addf %62, %70 : vector<24x256xf32>
    %c0_31 = arith.constant 0 : index
    %c32_32 = arith.constant 32 : index
    %72 = vector.load %arg8[%c0_31, %c32_32] : memref<24x320xf32, #tpu.memory_space<vmem>>, vector<24x256xf32>
    %73 = vector.extract_strided_slice %21 {offsets = [0, 4], sizes = [24, 1], strides = [1, 1]} : vector<24x9xf32> to vector<24x1xf32>
    %74 = vector.broadcast %73 : vector<24x1xf32> to vector<24x256xf32>
    %75 = arith.mulf %72, %74 : vector<24x256xf32>
    %76 = arith.addf %71, %75 : vector<24x256xf32>
    %c0_33 = arith.constant 0 : index
    %c33 = arith.constant 33 : index
    %77 = vector.load %arg8[%c0_33, %c33] : memref<24x320xf32, #tpu.memory_space<vmem>>, vector<24x256xf32>
    %78 = vector.extract_strided_slice %21 {offsets = [0, 5], sizes = [24, 1], strides = [1, 1]} : vector<24x9xf32> to vector<24x1xf32>
    %79 = vector.broadcast %78 : vector<24x1xf32> to vector<24x256xf32>
    %80 = arith.mulf %77, %79 : vector<24x256xf32>
    %c15_i32_34 = arith.constant 15 : i32
    %81 = vector.broadcast %c15_i32_34 : i32 to vector<24x256xi32>
    %82 = arith.cmpi slt, %38, %81 : vector<24x256xi32>
    %cst_35 = arith.constant 0.000000e+00 : f32
    %83 = vector.broadcast %cst_35 : f32 to vector<24x256xf32>
    %84 = arith.select %82, %80, %83 : vector<24x256xi1>, vector<24x256xf32>
    %85 = arith.addf %76, %84 : vector<24x256xf32>
    %c0_36 = arith.constant 0 : index
    %c47 = arith.constant 47 : index
    %86 = vector.load %arg8[%c0_36, %c47] : memref<24x320xf32, #tpu.memory_space<vmem>>, vector<24x256xf32>
    %87 = vector.extract_strided_slice %21 {offsets = [0, 6], sizes = [24, 1], strides = [1, 1]} : vector<24x9xf32> to vector<24x1xf32>
    %88 = vector.broadcast %87 : vector<24x1xf32> to vector<24x256xf32>
    %89 = arith.mulf %86, %88 : vector<24x256xf32>
    %c1_i32_37 = arith.constant 1 : i32
    %90 = vector.broadcast %c1_i32_37 : i32 to vector<24x256xi32>
    %91 = arith.cmpi sge, %38, %90 : vector<24x256xi32>
    %cst_38 = arith.constant 0.000000e+00 : f32
    %92 = vector.broadcast %cst_38 : f32 to vector<24x256xf32>
    %93 = arith.select %91, %89, %92 : vector<24x256xi1>, vector<24x256xf32>
    %94 = arith.addf %85, %93 : vector<24x256xf32>
    %c0_39 = arith.constant 0 : index
    %c48 = arith.constant 48 : index
    %95 = vector.load %arg8[%c0_39, %c48] : memref<24x320xf32, #tpu.memory_space<vmem>>, vector<24x256xf32>
    %96 = vector.extract_strided_slice %21 {offsets = [0, 7], sizes = [24, 1], strides = [1, 1]} : vector<24x9xf32> to vector<24x1xf32>
    %97 = vector.broadcast %96 : vector<24x1xf32> to vector<24x256xf32>
    %98 = arith.mulf %95, %97 : vector<24x256xf32>
    %99 = arith.addf %94, %98 : vector<24x256xf32>
    %c0_40 = arith.constant 0 : index
    %c49 = arith.constant 49 : index
    %100 = vector.load %arg8[%c0_40, %c49] : memref<24x320xf32, #tpu.memory_space<vmem>>, vector<24x256xf32>
    %101 = vector.extract_strided_slice %21 {offsets = [0, 8], sizes = [24, 1], strides = [1, 1]} : vector<24x9xf32> to vector<24x1xf32>
    %102 = vector.broadcast %101 : vector<24x1xf32> to vector<24x256xf32>
    %103 = arith.mulf %100, %102 : vector<24x256xf32>
    %c15_i32_41 = arith.constant 15 : i32
    %104 = vector.broadcast %c15_i32_41 : i32 to vector<24x256xi32>
    %105 = arith.cmpi slt, %38, %104 : vector<24x256xi32>
    %cst_42 = arith.constant 0.000000e+00 : f32
    %106 = vector.broadcast %cst_42 : f32 to vector<24x256xf32>
    %107 = arith.select %105, %103, %106 : vector<24x256xi1>, vector<24x256xf32>
    %108 = arith.addf %99, %107 : vector<24x256xf32>
    %109 = vector.broadcast %3 : vector<24x1xf32> to vector<24x256xf32>
    %110 = arith.addf %108, %109 : vector<24x256xf32>
    %cst_43 = arith.constant 0.000000e+00 : f32
    %111 = vector.broadcast %cst_43 : f32 to vector<24x256xf32>
    %112 = arith.maximumf %110, %111 : vector<24x256xf32>
    %c0_44 = arith.constant 0 : index
    %c0_45 = arith.constant 0 : index
    %113 = vector.load %arg4[%c0_44, %c0_45] : memref<16x24xbf16, #tpu.memory_space<vmem>>, vector<16x24xbf16>
    %114 = arith.truncf %112 : vector<24x256xf32> to vector<24x256xbf16>
    %cst_46 = arith.constant dense<0.000000e+00> : vector<16x256xf32>
    %115 = tpu.matmul %113, %114, %cst_46 {dimension_numbers = #tpu.dot_dimension_numbers<[1], [0], [0], [1], [0, 0, 1, 1], [], []>} : vector<16x24xbf16>, vector<24x256xbf16>, vector<16x256xf32> -> vector<16x256xf32>
    %116 = vector.broadcast %4 : vector<16x1xf32> to vector<16x256xf32>
    %117 = arith.addf %115, %116 : vector<16x256xf32>
    %c0_47 = arith.constant 0 : index
    %c0_48 = arith.constant 0 : index
    %118 = vector.load %arg5[%c0_47, %c0_48] : memref<17x8xf32, #tpu.memory_space<vmem>>, vector<16x4xf32>
    %c0_49 = arith.constant 0 : index
    %c4_50 = arith.constant 4 : index
    %119 = vector.load %arg5[%c0_49, %c4_50] : memref<17x8xf32, #tpu.memory_space<vmem>>, vector<16x4xf32>
    %c16_51 = arith.constant 16 : index
    %c0_52 = arith.constant 0 : index
    %120 = vector.load %arg5[%c16_51, %c0_52] : memref<17x8xf32, #tpu.memory_space<vmem>>, vector<1x4xf32>
    %cst_53 = arith.constant dense<0.000000e+00> : vector<16xf32>
    %121 = vector.multi_reduction <add>, %117, %cst_53 [1] : vector<16x256xf32> to vector<16xf32>
    %122 = vector.shape_cast %121 : vector<16xf32> to vector<16x1xf32>
    %cst_54 = arith.constant 2.560000e+02 : f32
    %123 = vector.broadcast %cst_54 : f32 to vector<16x1xf32>
    %124 = arith.divf %122, %123 : vector<16x1xf32>
    %125 = vector.broadcast %124 : vector<16x1xf32> to vector<16x4xf32>
    %126 = arith.mulf %118, %125 : vector<16x4xf32>
    %cst_55 = arith.constant dense<0.000000e+00> : vector<4xf32>
    %127 = vector.multi_reduction <add>, %126, %cst_55 [0] : vector<16x4xf32> to vector<4xf32>
    %128 = vector.shape_cast %127 : vector<4xf32> to vector<1x4xf32>
    %129 = arith.addf %128, %120 : vector<1x4xf32>
    %cst_56 = arith.constant 0.000000e+00 : f32
    %130 = vector.broadcast %cst_56 : f32 to vector<1x4xf32>
    %131 = arith.maximumf %129, %130 : vector<1x4xf32>
    %132 = vector.broadcast %131 : vector<1x4xf32> to vector<16x4xf32>
    %133 = arith.mulf %119, %132 : vector<16x4xf32>
    %cst_57 = arith.constant dense<0.000000e+00> : vector<16xf32>
    %134 = vector.multi_reduction <add>, %133, %cst_57 [1] : vector<16x4xf32> to vector<16xf32>
    %135 = vector.shape_cast %134 : vector<16xf32> to vector<16x1xf32>
    %136 = arith.addf %135, %6 : vector<16x1xf32>
    %cst_58 = arith.constant 3.000000e+00 : f32
    %137 = vector.broadcast %cst_58 : f32 to vector<16x1xf32>
    %138 = arith.addf %136, %137 : vector<16x1xf32>
    %cst_59 = arith.constant 0.000000e+00 : f32
    %cst_60 = arith.constant 6.000000e+00 : f32
    %139 = vector.broadcast %cst_59 : f32 to vector<16x1xf32>
    %140 = arith.maximumf %139, %138 : vector<16x1xf32>
    %141 = vector.broadcast %cst_60 : f32 to vector<16x1xf32>
    %142 = arith.minimumf %141, %140 : vector<16x1xf32>
    %cst_61 = arith.constant 0.166666672 : f32
    %143 = vector.broadcast %cst_61 : f32 to vector<16x1xf32>
    %144 = arith.mulf %142, %143 : vector<16x1xf32>
    %145 = vector.broadcast %144 : vector<16x1xf32> to vector<16x256xf32>
    %146 = arith.mulf %117, %145 : vector<16x256xf32>
    %147 = arith.addf %146, %16 : vector<16x256xf32>
    %c0_62 = arith.constant 0 : index
    %c0_63 = arith.constant 0 : index
    %c0_64 = arith.constant 0 : index
    %148 = vector.load %arg7[%c0_62, %c0_63, %c0_64] : memref<1x16x256xf32, #tpu.memory_space<vmem>>, vector<1x16x256xf32>
    %149 = vector.shape_cast %148 : vector<1x16x256xf32> to vector<16x256xf32>
    %150 = vector.shape_cast %147 : vector<16x256xf32> to vector<1x16x256xf32>
    tpu.vector_store %arg7[%c0_62, %c0_63, %c0_64], %150 {strides = array<i32>} : memref<1x16x256xf32, #tpu.memory_space<vmem>>, vector<1x16x256xf32>,
    return
  }
  func.func @transform_0(%arg0: i32) -> (i32, i32, i32) {
    %c0_i32 = arith.constant 0 : i32
    %c0_i32_0 = arith.constant 0 : i32
    %c0_i32_1 = arith.constant 0 : i32
    return %arg0, %c0_i32, %c0_i32_0 : i32, i32, i32
  }
  func.func @transform_1(%arg0: i32) -> (i32, i32) {
    %c0_i32 = arith.constant 0 : i32
    %c0_i32_0 = arith.constant 0 : i32
    %c0_i32_1 = arith.constant 0 : i32
    return %c0_i32, %c0_i32_0 : i32, i32
  }
  func.func @transform_2(%arg0: i32) -> (i32, i32) {
    %c0_i32 = arith.constant 0 : i32
    %c0_i32_0 = arith.constant 0 : i32
    %c0_i32_1 = arith.constant 0 : i32
    return %c0_i32, %c0_i32_0 : i32, i32
  }
  func.func @transform_3(%arg0: i32) -> (i32, i32) {
    %c0_i32 = arith.constant 0 : i32
    %c0_i32_0 = arith.constant 0 : i32
    %c0_i32_1 = arith.constant 0 : i32
    return %c0_i32, %c0_i32_0 : i32, i32
  }
  func.func @transform_4(%arg0: i32) -> (i32, i32) {
    %c0_i32 = arith.constant 0 : i32
    %c0_i32_0 = arith.constant 0 : i32
    %c0_i32_1 = arith.constant 0 : i32
    return %c0_i32, %c0_i32_0 : i32, i32
  }
  func.func @transform_5(%arg0: i32) -> (i32, i32) {
    %c0_i32 = arith.constant 0 : i32
    %c0_i32_0 = arith.constant 0 : i32
    %c0_i32_1 = arith.constant 0 : i32
    return %c0_i32, %c0_i32_0 : i32, i32
  }
  func.func @transform_6(%arg0: i32) -> (i32, i32, i32) {
    %c0_i32 = arith.constant 0 : i32
    %c0_i32_0 = arith.constant 0 : i32
    %c0_i32_1 = arith.constant 0 : i32
    return %arg0, %c0_i32, %c0_i32_0 : i32, i32, i32
  }
}

</mosaic_0001>

<llo_original>
// kernel: tpu_custom_call.1
$region0: #{tpu_custom_call.1}
  #allocation0 [shape = 'u32[]', space=smem, size = 0x4, offset = 0x4, fixed_abs, tag = 'smem constant byte address 0x4 - core index']
  #allocation1 [shape = 'u32[144,128]{1,0:T(1,128)}', space=vmem, size = 0x12000, scoped, tag = 'internal scratch']
  #allocation2 [shape = 'f32[24,320]{1,0:T(8,128)}', space=vmem, size = 0x9000, scoped, tag = 'scratch operand']
  %s0 = inlined_call_operand.vmem [shape: bf16[2,8,256], index: 0, kind: input, shape index: {}]
  %s1 = inlined_call_operand.vmem [shape: bf16[40,8], index: 1, kind: input, shape index: {}]
  %s2 = inlined_call_operand.vmem [shape: f32[24,9], index: 2, kind: input, shape index: {}]
  %s3 = inlined_call_operand.vmem [shape: bf16[16,24], index: 3, kind: input, shape index: {}]
  %s4 = inlined_call_operand.vmem [shape: f32[17,8], index: 4, kind: input, shape index: {}]
  %s5 = inlined_call_operand.vmem [shape: f32[24,6], index: 5, kind: input, shape index: {}]
  %s6 = inlined_call_operand.hbm [shape: f32[2,16,256], index: 6, kind: output, shape index: {}]
  %s7 = sld [smem:[#allocation0]]
  $region57: #{tpu_custom_call.1} parent=0
    _
  %s9 = ssub.s32 1, %s7
  %s10 = scalar_select 0, %s9, %s7
  $region1: #{tpu_custom_call.1} parent=0
    #allocation3 [shape = 'u8[32768]{0}', space=vmem, size = 0x8000, scoped, tag = 'output window, operand 0']
    #allocation4 [shape = 's32[2]{0}', space=sflag, size = 0x8, scoped, tag = 'scoped memory for tpu_custom_call.1']
    %11 = vsyncpa [#allocation4], 0
    %s12 = scalar_lea.sflag [#allocation4], 1
    %13 = vsyncpa %s12, 0
    loop: start=0, step=1, limit=4
    $region2: #{tpu_custom_call.1} parent=1 // loop_pre_header
      _
    $region3: #{tpu_custom_call.1} parent=1 // loop_header
      %s15 = sphi 0, %s19
      %p16 = scmp.ge.s32.totalorder %s15, 4
      %s25 = sphi 0, %s27
      %s28 = sphi 0, %s25
      %s29 = sphi 0, %s28
      %s45 = sphi 0, %s29
      %s49 = sphi 0, %s49
      %s51 = sphi 0, %s49
      %s52 = sphi 0, %s51
      %s66 = sphi 0, %s52
      %s70 = sphi 0, %s70
      %s72 = sphi 0, %s70
      %s73 = sphi 0, %s72
      %s87 = sphi 0, %s73
      %s91 = sphi 0, %s91
      %s93 = sphi 0, %s91
      %s94 = sphi 0, %s93
      %s108 = sphi 0, %s94
      %s112 = sphi 0, %s112
      %s114 = sphi 0, %s112
      %s115 = sphi 0, %s114
      %s129 = sphi 0, %s115
      %s133 = sphi 0, %s133
      %s135 = sphi 0, %s133
      %s136 = sphi 0, %s135
      %s150 = sphi 0, %s136
      %s156 = sphi 0, %s158
      %s159 = sphi 0, %s156
      %s160 = sphi 0, %s159
      %s176 = sphi 0, %s160
    $region4: #{tpu_custom_call.1} parent=1 // loop_header_branch
      %18 = sbr.rel (%p16) target = $region8
    $region5: #{tpu_custom_call.1} parent=1 // loop_body
      %s20 = ssub.s32 %s15, 1
      %s21 = ssub.s32 %s15, 2
      %s22 = sadd.s32 %s15, 1
      %s23 = ssub.s32 %s15, %s22
      %p24 = scmp.eq.s32.totalorder %s23, 0
      %s26 = sadd.s32 %s25, 1
      %s27 = scalar_select %p24, %s25, %s26
      %p30 = pneg %p24
      %p31 = scmp.eq.s32.totalorder %s15, 1
      %p32 = por %p30, %p31
      %p33 = scmp.ne.s32.totalorder %s25, %s28
      %p34 = scmp.eq.s32.totalorder %s15, 0
      %p35 = por %p33, %p34
      %p36 = scmp.ne.s32.totalorder %s25, %s28
      %p37 = scmp.eq.s32.totalorder %s20, 1
      %p38 = por %p36, %p37
      %p39 = scmp.ne.s32.totalorder %s28, %s29
      %p40 = scmp.eq.s32.totalorder %s20, 0
      %p41 = por %p39, %p40
      %p42 = scmp.ne.s32.totalorder %s28, %s29
      %p43 = scmp.eq.s32.totalorder %s21, 1
      %p44 = por %p42, %p43
      %p46 = scmp.ne.s32.totalorder %s29, %s45
      %p47 = scmp.eq.s32.totalorder %s21, 0
      %p48 = por %p46, %p47
      %s50 = sadd.s32 %s49, 1
      %p53 = scmp.eq.s32.totalorder %s15, 1
      %p54 = scmp.ne.s32.totalorder %s49, %s51
      %p55 = scmp.eq.s32.totalorder %s15, 0
      %p56 = por %p54, %p55
      %p57 = scmp.ne.s32.totalorder %s49, %s51
      %p58 = scmp.eq.s32.totalorder %s20, 1
      %p59 = por %p57, %p58
      %p60 = scmp.ne.s32.totalorder %s51, %s52
      %p61 = scmp.eq.s32.totalorder %s20, 0
      %p62 = por %p60, %p61
      %p63 = scmp.ne.s32.totalorder %s51, %s52
      %p64 = scmp.eq.s32.totalorder %s21, 1
      %p65 = por %p63, %p64
      %p67 = scmp.ne.s32.totalorder %s52, %s66
      %p68 = scmp.eq.s32.totalorder %s21, 0
      %p69 = por %p67, %p68
      %s71 = sadd.s32 %s70, 1
      %p74 = scmp.eq.s32.totalorder %s15, 1
      %p75 = scmp.ne.s32.totalorder %s70, %s72
      %p76 = scmp.eq.s32.totalorder %s15, 0
      %p77 = por %p75, %p76
      %p78 = scmp.ne.s32.totalorder %s70, %s72
      %p79 = scmp.eq.s32.totalorder %s20, 1
      %p80 = por %p78, %p79
      %p81 = scmp.ne.s32.totalorder %s72, %s73
      %p82 = scmp.eq.s32.totalorder %s20, 0
      %p83 = por %p81, %p82
      %p84 = scmp.ne.s32.totalorder %s72, %s73
      %p85 = scmp.eq.s32.totalorder %s21, 1
      %p86 = por %p84, %p85
      %p88 = scmp.ne.s32.totalorder %s73, %s87
      %p89 = scmp.eq.s32.totalorder %s21, 0
      %p90 = por %p88, %p89
      %s92 = sadd.s32 %s91, 1
      %p95 = scmp.eq.s32.totalorder %s15, 1
      %p96 = scmp.ne.s32.totalorder %s91, %s93
      %p97 = scmp.eq.s32.totalorder %s15, 0
      %p98 = por %p96, %p97
      %p99 = scmp.ne.s32.totalorder %s91, %s93
      %p100 = scmp.eq.s32.totalorder %s20, 1
      %p101 = por %p99, %p100
      %p102 = scmp.ne.s32.totalorder %s93, %s94
      %p103 = scmp.eq.s32.totalorder %s20, 0
      %p104 = por %p102, %p103
      %p105 = scmp.ne.s32.totalorder %s93, %s94
      %p106 = scmp.eq.s32.totalorder %s21, 1
      %p107 = por %p105, %p106
      %p109 = scmp.ne.s32.totalorder %s94, %s108
      %p110 = scmp.eq.s32.totalorder %s21, 0
      %p111 = por %p109, %p110
      %s113 = sadd.s32 %s112, 1
      %p116 = scmp.eq.s32.totalorder %s15, 1
      %p117 = scmp.ne.s32.totalorder %s112, %s114
      %p118 = scmp.eq.s32.totalorder %s15, 0
      %p119 = por %p117, %p118
      %p120 = scmp.ne.s32.totalorder %s112, %s114
      %p121 = scmp.eq.s32.totalorder %s20, 1
      %p122 = por %p120, %p121
      %p123 = scmp.ne.s32.totalorder %s114, %s115
      %p124 = scmp.eq.s32.totalorder %s20, 0
      %p125 = por %p123, %p124
      %p126 = scmp.ne.s32.totalorder %s114, %s115
      %p127 = scmp.eq.s32.totalorder %s21, 1
      %p128 = por %p126, %p127
      %p130 = scmp.ne.s32.totalorder %s115, %s129
      %p131 = scmp.eq.s32.totalorder %s21, 0
      %p132 = por %p130, %p131
      %s134 = sadd.s32 %s133, 1
      %p137 = scmp.eq.s32.totalorder %s15, 1
      %p138 = scmp.ne.s32.totalorder %s133, %s135
      %p139 = scmp.eq.s32.totalorder %s15, 0
      %p140 = por %p138, %p139
      %p141 = scmp.ne.s32.totalorder %s133, %s135
      %p142 = scmp.eq.s32.totalorder %s20, 1
      %p143 = por %p141, %p142
      %p144 = scmp.ne.s32.totalorder %s135, %s136
      %p145 = scmp.eq.s32.totalorder %s20, 0
      %p146 = por %p144, %p145
      %p147 = scmp.ne.s32.totalorder %s135, %s136
      %p148 = scmp.eq.s32.totalorder %s21, 1
      %p149 = por %p147, %p148
      %p151 = scmp.ne.s32.totalorder %s136, %s150
      %p152 = scmp.eq.s32.totalorder %s21, 0
      %p153 = por %p151, %p152
      %s154 = ssub.s32 %s15, %s22
      %p155 = scmp.eq.s32.totalorder %s154, 0
      %s157 = sadd.s32 %s156, 1
      %s158 = scalar_select %p155, %s156, %s157
      %p161 = pneg %p155
      %p162 = scmp.eq.s32.totalorder %s15, 1
      %p163 = por %p161, %p162
      %p164 = scmp.ne.s32.totalorder %s156, %s159
      %p165 = scmp.eq.s32.totalorder %s15, 0
      %p166 = por %p164, %p165
      %p167 = scmp.ne.s32.totalorder %s156, %s159
      %p168 = scmp.eq.s32.totalorder %s20, 1
      %p169 = por %p167, %p168
      %p170 = scmp.ne.s32.totalorder %s159, %s160
      %p171 = scmp.eq.s32.totalorder %s20, 0
      %p172 = por %p170, %p171
      %p173 = scmp.ne.s32.totalorder %s159, %s160
      %p174 = scmp.eq.s32.totalorder %s21, 1
      %p175 = por %p173, %p174
      %p177 = scmp.ne.s32.totalorder %s160, %s176
      %p178 = scmp.eq.s32.totalorder %s21, 0
      %p179 = por %p177, %p178
      %p180 = scmp.le.s32.totalorder 1, %s15
      %p181 = scmp.lt.s32.totalorder %s15, 3
      %p182 = pnand %p180, %p181
      %p183 = pneg %p182
      // Predicated region
      $region9: #{tpu_custom_call.1} parent=5 // pred_check
        _
      $region10: #{tpu_custom_call.1} parent=5 // pred_check_branch
        %185 = sbr.rel (%p182) target = $region12
      $region11: #{tpu_custom_call.1} parent=5 // pred_region
        %s186 = ssub.s32 %s15, 1
        // Predicated region
        $region13: #{tpu_custom_call.1} parent=11 // pred_check
          %p187 = pneg %p62
        $region14: #{tpu_custom_call.1} parent=11 // pred_check_branch
          %189 = sbr.rel (%p187) target = $region16
        $region15: #{tpu_custom_call.1} parent=11 // pred_region
          _
        $region16: #{tpu_custom_call.1} parent=11 // pred_fallthru
          _
        // Predicated region
        $region17: #{tpu_custom_call.1} parent=11 // pred_check
          %p190 = pneg %p83
        $region18: #{tpu_custom_call.1} parent=11 // pred_check_branch
          %192 = sbr.rel (%p190) target = $region20
        $region19: #{tpu_custom_call.1} parent=11 // pred_region
          _
        $region20: #{tpu_custom_call.1} parent=11 // pred_fallthru
          _
        // Predicated region
        $region21: #{tpu_custom_call.1} parent=11 // pred_check
          %p193 = pneg %p104
        $region22: #{tpu_custom_call.1} parent=11 // pred_check_branch
          %195 = sbr.rel (%p193) target = $region24
        $region23: #{tpu_custom_call.1} parent=11 // pred_region
          _
        $region24: #{tpu_custom_call.1} parent=11 // pred_fallthru
          _
        // Predicated region
        $region25: #{tpu_custom_call.1} parent=11 // pred_check
          %p196 = pneg %p125
        $region26: #{tpu_custom_call.1} parent=11 // pred_check_branch
          %198 = sbr.rel (%p196) target = $region28
        $region27: #{tpu_custom_call.1} parent=11 // pred_region
          _
        $region28: #{tpu_custom_call.1} parent=11 // pred_fallthru
          _
        // Predicated region
        $region29: #{tpu_custom_call.1} parent=11 // pred_check
          %p199 = pneg %p146
        $region30: #{tpu_custom_call.1} parent=11 // pred_check_branch
          %201 = sbr.rel (%p199) target = $region32
        $region31: #{tpu_custom_call.1} parent=11 // pred_region
          _
        $region32: #{tpu_custom_call.1} parent=11 // pred_fallthru
          _
      $region12: #{tpu_custom_call.1} parent=5 // pred_fallthru
        _
      %p202 = scmp.lt.s32.totalorder %s15, 2
      // Predicated region
      $region33: #{tpu_custom_call.1} parent=5 // pred_check
        %p203 = pneg %p202
      $region34: #{tpu_custom_call.1} parent=5 // pred_check_branch
        %205 = sbr.rel (%p203) target = $region36
      $region35: #{tpu_custom_call.1} parent=5 // pred_region
        // Predicated region
        $region37: #{tpu_custom_call.1} parent=35 // pred_check
          %p206 = pneg %p35
        $region38: #{tpu_custom_call.1} parent=35 // pred_check_branch
          %208 = sbr.rel (%p206) target = $region40
        $region39: #{tpu_custom_call.1} parent=35 // pred_region
          %p209 = scmp.lt.s32.totalorder %s15, 1
          %s210 = scalar_select %p209, %s15, 1
          %s211 = smul.addr %s210, 2
          %s212 = smul.addr %s211, 4
          %s213 = scalar_lea.vmem %s0, %s212
        $region40: #{tpu_custom_call.1} parent=35 // pred_fallthru
          _
      $region36: #{tpu_custom_call.1} parent=5 // pred_fallthru
        _
      %p214 = scmp.le.s32.totalorder 1, %s15
      %p215 = scmp.lt.s32.totalorder %s15, 3
      %p216 = pnand %p214, %p215
      %p217 = pneg %p216
      // Predicated region
      $region41: #{tpu_custom_call.1} parent=5 // pred_check
        _
      $region42: #{tpu_custom_call.1} parent=5 // pred_check_branch
        %219 = sbr.rel (%p216) target = $region44
      $region43: #{tpu_custom_call.1} parent=5 // pred_region
        %s220 = ssub.s32 %s15, 1
        %p221 = scmp.lt.s32.totalorder %s20, 1
        %s222 = scalar_select %p221, %s20, 1
        %s223 = smul.addr %s222, 2
        %s224 = smul.addr %s223, 4
        %s225 = scalar_lea.vmem %s0, %s224
        %p226 = pneg %p41
        %p227 = pneg %p38
        %p228 = pneg %p62
        %p229 = pneg %p59
        %p230 = pneg %p83
        %p231 = pneg %p80
        %p232 = pneg %p104
        %p233 = pneg %p101
        %p234 = pneg %p125
        %p235 = pneg %p122
        %p236 = pneg %p146
        %p237 = pneg %p143
        %p238 = pneg %p172
        %p239 = pneg %p169
        %s240 = sand.u32 %s159, 1
        %s241 = scalar_lea.sflag [#allocation4], %s240
        %s242 = sand.u32 %s159, 1
        %s243 = smul.addr %s242, 32
        %s244 = scalar_lea.vmem [#allocation3], %s243
        %p245 = scmp.lt.s32.totalorder %s20, 1
        %s246 = scalar_select %p245, %s20, 1
        %s247 = smul.addr %s246, 2
        %s248 = smul.addr %s247, 4
        %s249 = scalar_lea.vmem %s0, %s248
        %v251 = vld [vmem:[%s249] sm:$0xff]
        %v252 = vld [vmem:[%s5] sm:$0xff]
        %v253 = vld [vmem:[%s5 + $0x8] sm:$0xff]
        %v254 = vld [vmem:[%s5 + $0x10] sm:$0xff]
        %v255 = vld [vmem:[%s1] sm:$0xf]
        %v256 = vld [vmem:[%s1 + $0x4] sm:$0xf]
        %v257 = vld [vmem:[%s1 + $0x8] sm:$0xf]
        %v258 = vld [vmem:[%s1 + $0xc] sm:$0xf]
        %v259 = vld [vmem:[%s1 + $0x10] sm:$0xf]
        %v265 = vunpack.c.l.b16 %v255
        %v266 = vunpack.c.l.b16 %v256
        %v267 = vunpack.c.l.b16 %v257
        %v268 = vunpack.c.l.b16 %v258
        %v269 = vunpack.c.l.b16 %v259
        %v270 = vpack.c.b16 %v266, %v265
        %v271 = vpack.c.b16 %v268, %v267
        %v272 = vpack.c.b16 %v269, %v269
        %v274 = vunpack.c.l.b16 %v251
        %v275 = vunpack.c.h.b16 %v251
        %v276 = vpack.c.b16 %v274, %v274
        %v277 = vpack.c.b16 %v275, %v275
        %vm278 = vcmask 64512
        %v280 = vsel %vm278, %v270, 0
        %v283 = vsel %vm278, %v271, 0
        %v286 = vsel %vm278, %v272, 0
        %vm288 = vcmask 1043456
        %v290 = vsel %vm288, %v276, 0
        %v293 = vsel %vm288, %v277, 0
        %295 = vmatprep.subr.bf16.mxu0 0
        %296 = vmatpush1.bf16.msra.mxu0 0
        %297 = vmatprep.subr.bf16.mxu0 0
        %298 = vmatpush1.bf16.msra.mxu0 0
        %299 = vmatprep.subr.bf16.mxu0 0
        %300 = vmatpush1.bf16.msra.mxu0 0
        %301 = vmatprep.subr.bf16.mxu0 0
        %302 = vmatpush1.bf16.msra.mxu0 0
        %303 = vmatprep.subr.bf16.mxu0 0
        %304 = vmatpush1.bf16.msra.mxu0 0
        %305 = vmatprep.subr.bf16.mxu0 0
        %306 = vmatpush1.bf16.msra.mxu0 0
        %307 = vmatprep.subr.bf16.mxu0 0
        %308 = vmatpush1.bf16.msra.mxu0 0
        %309 = vmatprep.subr.bf16.mxu0 %v293
        %310 = vmatpush1.bf16.msra.mxu0 %v290
        %311 = vmatprep.subr.bf16.mxu0 0
        %312 = vmatpush2.bf16.msra.mxu0 0
        %313 = vmatprep.subr.bf16.mxu0 0
        %314 = vmatpush2.bf16.msra.mxu0 0
        %315 = vmatprep.subr.bf16.mxu0 0
        %316 = vmatpush2.bf16.msra.mxu0 0
        %317 = vmatprep.subr.bf16.mxu0 0
        %318 = vmatpush2.bf16.msra.mxu0 0
        %319 = vmatprep.subr.bf16.mxu0 0
        %320 = vmatpush2.bf16.msra.mxu0 0
        %321 = vmatprep.subr.bf16.mxu0 0
        %322 = vmatpush2.bf16.msra.mxu0 0
        %323 = vmatprep.subr.bf16.mxu0 0
        %324 = vmatpush2.bf16.msra.mxu0 0
        %325 = vmatprep.subr.bf16.mxu0 0
        %326 = vmatpush2.bf16.msra.mxu0 0
        %327 = vmatprep.mubr.bf16.mxu0 0
        %328 = vmatmul.mubr.bf16.gmra.mxu0 %v280
        %v329 = vpop.f32.mrf.mxu0
        %v330 = vadd.f32 0.0, %v329
        %v331 = vpop.f32.mrf.mxu0
        %v332 = vadd.f32 0.0, %v331
        %v333 = vpop.f32.mrf.mxu0
        %v334 = vadd.f32 0.0, %v333
        %v335 = vpop.f32.mrf.mxu0
        %v336 = vadd.f32 0.0, %v335
        %337 = vmatprep.mubr.bf16.mxu0 0
        %338 = vmatmul.mubr.bf16.gmra.mxu0 %v283
        %v339 = vpop.f32.mrf.mxu0
        %v340 = vadd.f32 0.0, %v339
        %v341 = vpop.f32.mrf.mxu0
        %v342 = vadd.f32 0.0, %v341
        %v343 = vpop.f32.mrf.mxu0
        %v344 = vadd.f32 0.0, %v343
        %v345 = vpop.f32.mrf.mxu0
        %v346 = vadd.f32 0.0, %v345
        %347 = vmatprep.mubr.bf16.mxu0 0
        %348 = vmatmul.mubr.bf16.gmra.mxu0 %v286
        %v349 = vpop.f32.mrf.mxu0
        %v350 = vadd.f32 0.0, %v349
        %v351 = vpop.f32.mrf.mxu0
        %v352 = vadd.f32 0.0, %v351
        %v353 = vpop.f32.mrf.mxu0
        %v354 = vpop.f32.mrf.mxu0
        %355 = vdwg.mxu0
        %357 = vset.pattern.permute.xlu0 0
        %358 = vperm.xlu0 %357, %v252
        %v359 = vpop.permute.xlu0 %358
        %362 = vset.pattern.permute.xlu0 0
        %363 = vperm.xlu0 %362, %v253
        %v364 = vpop.permute.xlu0 %363
        %367 = vset.pattern.permute.xlu0 0
        %368 = vperm.xlu0 %367, %v254
        %v369 = vpop.permute.xlu0 %368
        %v371 = vadd.f32 %v330, %v359
        %v372 = vadd.f32 %v332, %v359
        %v373 = vadd.f32 %v334, %v364
        %v374 = vadd.f32 %v336, %v364
        %v375 = vadd.f32 %v340, %v369
        %v376 = vadd.f32 %v342, %v369
        %v377 = vmax.f32 %v371, 0.0
        %v378 = vmax.f32 %v372, 0.0
        %v379 = vmax.f32 %v373, 0.0
        %v380 = vmax.f32 %v374, 0.0
        %v381 = vmax.f32 %v375, 0.0
        %v382 = vmax.f32 %v376, 0.0
        %383 = vset.pattern.permute.xlu0 3
        %384 = vperm.xlu0 %383, %v252
        %v385 = vpop.permute.xlu0 %384
        %387 = vset.pattern.permute.xlu0 3
        %388 = vperm.xlu0 %387, %v253
        %v389 = vpop.permute.xlu0 %388
        %v391 = vadd.f32 %v344, %v385
        %v392 = vadd.f32 %v346, %v385
        %v393 = vadd.f32 %v350, %v389
        %v394 = vadd.f32 %v352, %v389
        %vm395 = vcmask 261120
        %396 = vst.msk [vmem:[#allocation2] sm:$0xff] %vm395, 0.0
        %397 = vst.msk [vmem:[#allocation2 + $0x18] sm:$0xff] %vm395, 0.0
        %398 = vst.msk [vmem:[#allocation2 + $0x30] sm:$0xff] %vm395, 0.0
        %vm399 = vcmask 523520
        %400 = vst.msk [vmem:[#allocation2 + $0x10] sm:$0xff] %vm399, 0.0
        %401 = vst.msk [vmem:[#allocation2 + $0x28] sm:$0xff] %vm399, 0.0
        %402 = vst.msk [vmem:[#allocation2 + $0x40] sm:$0xff] %vm399, 0.0
        %409 = vrot.lane.b32.xlu0 %v377, 32
        %v410 = vpop.permute.xlu0 %409
        %411 = vrot.lane.b32.xlu0 %v378, 32
        %v412 = vpop.permute.xlu0 %411
        %413 = vrot.lane.b32.xlu0 %v379, 32
        %v414 = vpop.permute.xlu0 %413
        %415 = vrot.lane.b32.xlu0 %v380, 32
        %v416 = vpop.permute.xlu0 %415
        %417 = vrot.lane.b32.xlu0 %v381, 32
        %v418 = vpop.permute.xlu0 %417
        %419 = vrot.lane.b32.xlu0 %v382, 32
        %v420 = vpop.permute.xlu0 %419
        %v421 = vsel %vm395, %v410, %v412
        %v422 = vsel %vm395, %v414, %v416
        %v423 = vsel %vm395, %v418, %v420
        %vm433 = vcmask 1047808
        %434 = vst.msk [vmem:[#allocation2] sm:$0xff] %vm433, %v410
        %435 = vst [vmem:[#allocation2 + $0x8] sm:$0xff] %v421
        %436 = vst.msk [vmem:[#allocation2 + $0x10] sm:$0xff] %vm395, %v412
        %437 = vst.msk [vmem:[#allocation2 + $0x18] sm:$0xff] %vm433, %v414
        %438 = vst [vmem:[#allocation2 + $0x20] sm:$0xff] %v422
        %439 = vst.msk [vmem:[#allocation2 + $0x28] sm:$0xff] %vm395, %v416
        %440 = vst.msk [vmem:[#allocation2 + $0x30] sm:$0xff] %vm433, %v418
        %441 = vst [vmem:[#allocation2 + $0x38] sm:$0xff] %v423
        %442 = vst.msk [vmem:[#allocation2 + $0x40] sm:$0xff] %vm395, %v420
        %v443 = vld [vmem:[%s2] sm:$0xff]
        %v444 = vld [vmem:[%s2 + $0x8] sm:$0xff]
        %v445 = vld [vmem:[%s2 + $0x10] sm:$0xff]
        %v446 = vlaneseq
        %v447 = vand.u32 %v446, 127
        %v448 = vadd.s32 %v447, 128
        %vm449 = vcmp.lt.s32.totalorder %v447, 0
        %v450 = vsub.s32 0, %v447
        %v451 = vsel %vm449, %v450, %v447
        %v452 = vshrl.u32 %v451, 4
        %v453 = vand.u32 %v451, 15
        %v454 = vsub.s32 0, %v453
        %v455 = vsel %vm449, %v454, %v453
        %vm456 = vcmp.lt.s32.totalorder %v448, 0
        %v457 = vsub.s32 0, %v448
        %v458 = vsel %vm456, %v457, %v448
        %v459 = vshrl.u32 %v458, 4
        %v460 = vand.u32 %v458, 15
        %v461 = vsub.s32 0, %v460
        %v462 = vsel %vm456, %v461, %v460
        %vm463 = vcmp.ne.s32.totalorder %v455, 0
        %vm464 = vcmp.ne.s32.totalorder %v462, 0
        %vm465 = vcmp.lt.s32.totalorder %v455, 0
        %vm466 = vcmp.lt.s32.totalorder %v462, 0
        %vm467 = vmand %vm465, %vm463
        %vm468 = vmand %vm466, %vm464
        %v469 = vadd.s32 %v455, 16
        %v470 = vadd.s32 %v462, 16
        %v471 = vsel %vm467, %v469, %v455
        %v472 = vsel %vm468, %v470, %v462
        %v473 = vld [vmem:[#allocation2] sm:$0xff]
        %v474 = vld [vmem:[#allocation2 + $0x8] sm:$0xff]
        %v475 = vld [vmem:[#allocation2 + $0x10] sm:$0xff]
        %v476 = vld [vmem:[#allocation2 + $0x18] sm:$0xff]
        %v477 = vld [vmem:[#allocation2 + $0x20] sm:$0xff]
        %v478 = vld [vmem:[#allocation2 + $0x28] sm:$0xff]
        %v479 = vld [vmem:[#allocation2 + $0x30] sm:$0xff]
        %v480 = vld [vmem:[#allocation2 + $0x38] sm:$0xff]
        %v481 = vld [vmem:[#allocation2 + $0x40] sm:$0xff]
        %483 = vset.pattern.permute.xlu0 0
        %484 = vperm.xlu0 %483, %v443
        %v485 = vpop.permute.xlu0 %484
        %488 = vset.pattern.permute.xlu0 0
        %489 = vperm.xlu0 %488, %v444
        %v490 = vpop.permute.xlu0 %489
        %493 = vset.pattern.permute.xlu0 0
        %494 = vperm.xlu0 %493, %v445
        %v495 = vpop.permute.xlu0 %494
        %v497 = vmul.f32 %v473, %v485
        %v498 = vmul.f32 %v474, %v485
        %v499 = vmul.f32 %v475, %v485
        %v500 = vmul.f32 %v476, %v490
        %v501 = vmul.f32 %v477, %v490
        %v502 = vmul.f32 %v478, %v490
        %v503 = vmul.f32 %v479, %v495
        %v504 = vmul.f32 %v480, %v495
        %v505 = vmul.f32 %v481, %v495
        %vm506 = vcmp.ge.s32.totalorder %v471, 1
        %vm507 = vcmp.ge.s32.totalorder %v472, 1
        %517 = vrot.lane.b32.xlu0 %v497, 113
        %v518 = vpop.permute.xlu0 %517
        %519 = vrot.lane.b32.xlu0 %v498, 113
        %v520 = vpop.permute.xlu0 %519
        %521 = vrot.lane.b32.xlu0 %v499, 113
        %v522 = vpop.permute.xlu0 %521
        %523 = vrot.lane.b32.xlu0 %v500, 113
        %v524 = vpop.permute.xlu0 %523
        %525 = vrot.lane.b32.xlu0 %v501, 113
        %v526 = vpop.permute.xlu0 %525
        %527 = vrot.lane.b32.xlu0 %v502, 113
        %v528 = vpop.permute.xlu0 %527
        %529 = vrot.lane.b32.xlu0 %v503, 113
        %v530 = vpop.permute.xlu0 %529
        %531 = vrot.lane.b32.xlu0 %v504, 113
        %v532 = vpop.permute.xlu0 %531
        %533 = vrot.lane.b32.xlu0 %v505, 113
        %v534 = vpop.permute.xlu0 %533
        %vm535 = vcmask 924672
        %v536 = vsel %vm535, %v518, %v520
        %v537 = vsel %vm535, %v520, %v522
        %v538 = vsel %vm535, %v524, %v526
        %v539 = vsel %vm535, %v526, %v528
        %v540 = vsel %vm535, %v530, %v532
        %v541 = vsel %vm535, %v532, %v534
        %v548 = vsel %vm506, %v536, 0.0
        %v549 = vsel %vm507, %v537, 0.0
        %v550 = vsel %vm506, %v538, 0.0
        %v551 = vsel %vm507, %v539, 0.0
        %v552 = vsel %vm506, %v540, 0.0
        %v553 = vsel %vm507, %v541, 0.0
        %v554 = vadd.f32 %v548, 0.0
        %v555 = vadd.f32 %v549, 0.0
        %v556 = vadd.f32 %v550, 0.0
        %v557 = vadd.f32 %v551, 0.0
        %v558 = vadd.f32 %v552, 0.0
        %v559 = vadd.f32 %v553, 0.0
        %560 = vset.pattern.permute.xlu0 1
        %561 = vperm.xlu0 %560, %v443
        %v562 = vpop.permute.xlu0 %561
        %564 = vset.pattern.permute.xlu0 1
        %565 = vperm.xlu0 %564, %v444
        %v566 = vpop.permute.xlu0 %565
        %568 = vset.pattern.permute.xlu0 1
        %569 = vperm.xlu0 %568, %v445
        %v570 = vpop.permute.xlu0 %569
        %v572 = vmul.f32 %v473, %v562
        %v573 = vmul.f32 %v474, %v562
        %v574 = vmul.f32 %v475, %v562
        %v575 = vmul.f32 %v476, %v566
        %v576 = vmul.f32 %v477, %v566
        %v577 = vmul.f32 %v478, %v566
        %v578 = vmul.f32 %v479, %v570
        %v579 = vmul.f32 %v480, %v570
        %v580 = vmul.f32 %v481, %v570
        %590 = vrot.lane.b32.xlu0 %v572, 112
        %v591 = vpop.permute.xlu0 %590
        %592 = vrot.lane.b32.xlu0 %v573, 112
        %v593 = vpop.permute.xlu0 %592
        %594 = vrot.lane.b32.xlu0 %v574, 112
        %v595 = vpop.permute.xlu0 %594
        %596 = vrot.lane.b32.xlu0 %v575, 112
        %v597 = vpop.permute.xlu0 %596
        %598 = vrot.lane.b32.xlu0 %v576, 112
        %v599 = vpop.permute.xlu0 %598
        %600 = vrot.lane.b32.xlu0 %v577, 112
        %v601 = vpop.permute.xlu0 %600
        %602 = vrot.lane.b32.xlu0 %v578, 112
        %v603 = vpop.permute.xlu0 %602
        %604 = vrot.lane.b32.xlu0 %v579, 112
        %v605 = vpop.permute.xlu0 %604
        %606 = vrot.lane.b32.xlu0 %v580, 112
        %v607 = vpop.permute.xlu0 %606
        %vm608 = vcmask 916480
        %v609 = vsel %vm608, %v591, %v593
        %v610 = vsel %vm608, %v593, %v595
        %v611 = vsel %vm608, %v597, %v599
        %v612 = vsel %vm608, %v599, %v601
        %v613 = vsel %vm608, %v603, %v605
        %v614 = vsel %vm608, %v605, %v607
        %v621 = vadd.f32 %v554, %v609
        %v622 = vadd.f32 %v555, %v610
        %v623 = vadd.f32 %v556, %v611
        %v624 = vadd.f32 %v557, %v612
        %v625 = vadd.f32 %v558, %v613
        %v626 = vadd.f32 %v559, %v614
        %627 = vset.pattern.permute.xlu0 2
        %628 = vperm.xlu0 %627, %v443
        %v629 = vpop.permute.xlu0 %628
        %631 = vset.pattern.permute.xlu0 2
        %632 = vperm.xlu0 %631, %v444
        %v633 = vpop.permute.xlu0 %632
        %635 = vset.pattern.permute.xlu0 2
        %636 = vperm.xlu0 %635, %v445
        %v637 = vpop.permute.xlu0 %636
        %v639 = vmul.f32 %v473, %v629
        %v640 = vmul.f32 %v474, %v629
        %v641 = vmul.f32 %v475, %v629
        %v642 = vmul.f32 %v476, %v633
        %v643 = vmul.f32 %v477, %v633
        %v644 = vmul.f32 %v478, %v633
        %v645 = vmul.f32 %v479, %v637
        %v646 = vmul.f32 %v480, %v637
        %v647 = vmul.f32 %v481, %v637
        %vm648 = vcmp.lt.s32.totalorder %v471, 15
        %vm649 = vcmp.lt.s32.totalorder %v472, 15
        %659 = vrot.lane.b32.xlu0 %v639, 111
        %v660 = vpop.permute.xlu0 %659
        %661 = vrot.lane.b32.xlu0 %v640, 111
        %v662 = vpop.permute.xlu0 %661
        %663 = vrot.lane.b32.xlu0 %v641, 111
        %v664 = vpop.permute.xlu0 %663
        %665 = vrot.lane.b32.xlu0 %v642, 111
        %v666 = vpop.permute.xlu0 %665
        %667 = vrot.lane.b32.xlu0 %v643, 111
        %v668 = vpop.permute.xlu0 %667
        %669 = vrot.lane.b32.xlu0 %v644, 111
        %v670 = vpop.permute.xlu0 %669
        %671 = vrot.lane.b32.xlu0 %v645, 111
        %v672 = vpop.permute.xlu0 %671
        %673 = vrot.lane.b32.xlu0 %v646, 111
        %v674 = vpop.permute.xlu0 %673
        %675 = vrot.lane.b32.xlu0 %v647, 111
        %v676 = vpop.permute.xlu0 %675
        %vm677 = vcmask 908288
        %v678 = vsel %vm677, %v660, %v662
        %v679 = vsel %vm677, %v662, %v664
        %v680 = vsel %vm677, %v666, %v668
        %v681 = vsel %vm677, %v668, %v670
        %v682 = vsel %vm677, %v672, %v674
        %v683 = vsel %vm677, %v674, %v676
        %v690 = vsel %vm648, %v678, 0.0
        %v691 = vsel %vm649, %v679, 0.0
        %v692 = vsel %vm648, %v680, 0.0
        %v693 = vsel %vm649, %v681, 0.0
        %v694 = vsel %vm648, %v682, 0.0
        %v695 = vsel %vm649, %v683, 0.0
        %v696 = vadd.f32 %v621, %v690
        %v697 = vadd.f32 %v622, %v691
        %v698 = vadd.f32 %v623, %v692
        %v699 = vadd.f32 %v624, %v693
        %v700 = vadd.f32 %v625, %v694
        %v701 = vadd.f32 %v626, %v695
        %702 = vset.pattern.permute.xlu0 3
        %703 = vperm.xlu0 %702, %v443
        %v704 = vpop.permute.xlu0 %703
        %706 = vset.pattern.permute.xlu0 3
        %707 = vperm.xlu0 %706, %v444
        %v708 = vpop.permute.xlu0 %707
        %710 = vset.pattern.permute.xlu0 3
        %711 = vperm.xlu0 %710, %v445
        %v712 = vpop.permute.xlu0 %711
        %v714 = vmul.f32 %v473, %v704
        %v715 = vmul.f32 %v474, %v704
        %v716 = vmul.f32 %v475, %v704
        %v717 = vmul.f32 %v476, %v708
        %v718 = vmul.f32 %v477, %v708
        %v719 = vmul.f32 %v478, %v708
        %v720 = vmul.f32 %v479, %v712
        %v721 = vmul.f32 %v480, %v712
        %v722 = vmul.f32 %v481, %v712
        %732 = vrot.lane.b32.xlu0 %v714, 97
        %v733 = vpop.permute.xlu0 %732
        %734 = vrot.lane.b32.xlu0 %v715, 97
        %v735 = vpop.permute.xlu0 %734
        %736 = vrot.lane.b32.xlu0 %v716, 97
        %v737 = vpop.permute.xlu0 %736
        %738 = vrot.lane.b32.xlu0 %v717, 97
        %v739 = vpop.permute.xlu0 %738
        %740 = vrot.lane.b32.xlu0 %v718, 97
        %v741 = vpop.permute.xlu0 %740
        %742 = vrot.lane.b32.xlu0 %v719, 97
        %v743 = vpop.permute.xlu0 %742
        %744 = vrot.lane.b32.xlu0 %v720, 97
        %v745 = vpop.permute.xlu0 %744
        %746 = vrot.lane.b32.xlu0 %v721, 97
        %v747 = vpop.permute.xlu0 %746
        %748 = vrot.lane.b32.xlu0 %v722, 97
        %v749 = vpop.permute.xlu0 %748
        %vm750 = vcmask 793600
        %v751 = vsel %vm750, %v733, %v735
        %v752 = vsel %vm750, %v735, %v737
        %v753 = vsel %vm750, %v739, %v741
        %v754 = vsel %vm750, %v741, %v743
        %v755 = vsel %vm750, %v745, %v747
        %v756 = vsel %vm750, %v747, %v749
        %v763 = vsel %vm506, %v751, 0.0
        %v764 = vsel %vm507, %v752, 0.0
        %v765 = vsel %vm506, %v753, 0.0
        %v766 = vsel %vm507, %v754, 0.0
        %v767 = vsel %vm506, %v755, 0.0
        %v768 = vsel %vm507, %v756, 0.0
        %v769 = vadd.f32 %v696, %v763
        %v770 = vadd.f32 %v697, %v764
        %v771 = vadd.f32 %v698, %v765
        %v772 = vadd.f32 %v699, %v766
        %v773 = vadd.f32 %v700, %v767
        %v774 = vadd.f32 %v701, %v768
        %775 = vset.pattern.permute.xlu0 4
        %776 = vperm.xlu0 %775, %v443
        %v777 = vpop.permute.xlu0 %776
        %779 = vset.pattern.permute.xlu0 4
        %780 = vperm.xlu0 %779, %v444
        %v781 = vpop.permute.xlu0 %780
        %783 = vset.pattern.permute.xlu0 4
        %784 = vperm.xlu0 %783, %v445
        %v785 = vpop.permute.xlu0 %784
        %v787 = vmul.f32 %v473, %v777
        %v788 = vmul.f32 %v474, %v777
        %v789 = vmul.f32 %v475, %v777
        %v790 = vmul.f32 %v476, %v781
        %v791 = vmul.f32 %v477, %v781
        %v792 = vmul.f32 %v478, %v781
        %v793 = vmul.f32 %v479, %v785
        %v794 = vmul.f32 %v480, %v785
        %v795 = vmul.f32 %v481, %v785
        %805 = vrot.lane.b32.xlu0 %v787, 96
        %v806 = vpop.permute.xlu0 %805
        %807 = vrot.lane.b32.xlu0 %v788, 96
        %v808 = vpop.permute.xlu0 %807
        %809 = vrot.lane.b32.xlu0 %v789, 96
        %v810 = vpop.permute.xlu0 %809
        %811 = vrot.lane.b32.xlu0 %v790, 96
        %v812 = vpop.permute.xlu0 %811
        %813 = vrot.lane.b32.xlu0 %v791, 96
        %v814 = vpop.permute.xlu0 %813
        %815 = vrot.lane.b32.xlu0 %v792, 96
        %v816 = vpop.permute.xlu0 %815
        %817 = vrot.lane.b32.xlu0 %v793, 96
        %v818 = vpop.permute.xlu0 %817
        %819 = vrot.lane.b32.xlu0 %v794, 96
        %v820 = vpop.permute.xlu0 %819
        %821 = vrot.lane.b32.xlu0 %v795, 96
        %v822 = vpop.permute.xlu0 %821
        %vm823 = vcmask 785408
        %v824 = vsel %vm823, %v806, %v808
        %v825 = vsel %vm823, %v808, %v810
        %v826 = vsel %vm823, %v812, %v814
        %v827 = vsel %vm823, %v814, %v816
        %v828 = vsel %vm823, %v818, %v820
        %v829 = vsel %vm823, %v820, %v822
        %v836 = vadd.f32 %v769, %v824
        %v837 = vadd.f32 %v770, %v825
        %v838 = vadd.f32 %v771, %v826
        %v839 = vadd.f32 %v772, %v827
        %v840 = vadd.f32 %v773, %v828
        %v841 = vadd.f32 %v774, %v829
        %842 = vset.pattern.permute.xlu0 5
        %843 = vperm.xlu0 %842, %v443
        %v844 = vpop.permute.xlu0 %843
        %846 = vset.pattern.permute.xlu0 5
        %847 = vperm.xlu0 %846, %v444
        %v848 = vpop.permute.xlu0 %847
        %850 = vset.pattern.permute.xlu0 5
        %851 = vperm.xlu0 %850, %v445
        %v852 = vpop.permute.xlu0 %851
        %v854 = vmul.f32 %v473, %v844
        %v855 = vmul.f32 %v474, %v844
        %v856 = vmul.f32 %v475, %v844
        %v857 = vmul.f32 %v476, %v848
        %v858 = vmul.f32 %v477, %v848
        %v859 = vmul.f32 %v478, %v848
        %v860 = vmul.f32 %v479, %v852
        %v861 = vmul.f32 %v480, %v852
        %v862 = vmul.f32 %v481, %v852
        %872 = vrot.lane.b32.xlu0 %v854, 95
        %v873 = vpop.permute.xlu0 %872
        %874 = vrot.lane.b32.xlu0 %v855, 95
        %v875 = vpop.permute.xlu0 %874
        %876 = vrot.lane.b32.xlu0 %v856, 95
        %v877 = vpop.permute.xlu0 %876
        %878 = vrot.lane.b32.xlu0 %v857, 95
        %v879 = vpop.permute.xlu0 %878
        %880 = vrot.lane.b32.xlu0 %v858, 95
        %v881 = vpop.permute.xlu0 %880
        %882 = vrot.lane.b32.xlu0 %v859, 95
        %v883 = vpop.permute.xlu0 %882
        %884 = vrot.lane.b32.xlu0 %v860, 95
        %v885 = vpop.permute.xlu0 %884
        %886 = vrot.lane.b32.xlu0 %v861, 95
        %v887 = vpop.permute.xlu0 %886
        %888 = vrot.lane.b32.xlu0 %v862, 95
        %v889 = vpop.permute.xlu0 %888
        %vm890 = vcmask 777216
        %v891 = vsel %vm890, %v873, %v875
        %v892 = vsel %vm890, %v875, %v877
        %v893 = vsel %vm890, %v879, %v881
        %v894 = vsel %vm890, %v881, %v883
        %v895 = vsel %vm890, %v885, %v887
        %v896 = vsel %vm890, %v887, %v889
        %v903 = vsel %vm648, %v891, 0.0
        %v904 = vsel %vm649, %v892, 0.0
        %v905 = vsel %vm648, %v893, 0.0
        %v906 = vsel %vm649, %v894, 0.0
        %v907 = vsel %vm648, %v895, 0.0
        %v908 = vsel %vm649, %v896, 0.0
        %v909 = vadd.f32 %v836, %v903
        %v910 = vadd.f32 %v837, %v904
        %v911 = vadd.f32 %v838, %v905
        %v912 = vadd.f32 %v839, %v906
        %v913 = vadd.f32 %v840, %v907
        %v914 = vadd.f32 %v841, %v908
        %915 = vset.pattern.permute.xlu0 6
        %916 = vperm.xlu0 %915, %v443
        %v917 = vpop.permute.xlu0 %916
        %919 = vset.pattern.permute.xlu0 6
        %920 = vperm.xlu0 %919, %v444
        %v921 = vpop.permute.xlu0 %920
        %923 = vset.pattern.permute.xlu0 6
        %924 = vperm.xlu0 %923, %v445
        %v925 = vpop.permute.xlu0 %924
        %v927 = vmul.f32 %v473, %v917
        %v928 = vmul.f32 %v474, %v917
        %v929 = vmul.f32 %v475, %v917
        %v930 = vmul.f32 %v476, %v921
        %v931 = vmul.f32 %v477, %v921
        %v932 = vmul.f32 %v478, %v921
        %v933 = vmul.f32 %v479, %v925
        %v934 = vmul.f32 %v480, %v925
        %v935 = vmul.f32 %v481, %v925
        %945 = vrot.lane.b32.xlu0 %v927, 81
        %v946 = vpop.permute.xlu0 %945
        %947 = vrot.lane.b32.xlu0 %v928, 81
        %v948 = vpop.permute.xlu0 %947
        %949 = vrot.lane.b32.xlu0 %v929, 81
        %v950 = vpop.permute.xlu0 %949
        %951 = vrot.lane.b32.xlu0 %v930, 81
        %v952 = vpop.permute.xlu0 %951
        %953 = vrot.lane.b32.xlu0 %v931, 81
        %v954 = vpop.permute.xlu0 %953
        %955 = vrot.lane.b32.xlu0 %v932, 81
        %v956 = vpop.permute.xlu0 %955
        %957 = vrot.lane.b32.xlu0 %v933, 81
        %v958 = vpop.permute.xlu0 %957
        %959 = vrot.lane.b32.xlu0 %v934, 81
        %v960 = vpop.permute.xlu0 %959
        %961 = vrot.lane.b32.xlu0 %v935, 81
        %v962 = vpop.permute.xlu0 %961
        %vm963 = vcmask 662528
        %v964 = vsel %vm963, %v946, %v948
        %v965 = vsel %vm963, %v948, %v950
        %v966 = vsel %vm963, %v952, %v954
        %v967 = vsel %vm963, %v954, %v956
        %v968 = vsel %vm963, %v958, %v960
        %v969 = vsel %vm963, %v960, %v962
        %v976 = vsel %vm506, %v964, 0.0
        %v977 = vsel %vm507, %v965, 0.0
        %v978 = vsel %vm506, %v966, 0.0
        %v979 = vsel %vm507, %v967, 0.0
        %v980 = vsel %vm506, %v968, 0.0
        %v981 = vsel %vm507, %v969, 0.0
        %v982 = vadd.f32 %v909, %v976
        %v983 = vadd.f32 %v910, %v977
        %v984 = vadd.f32 %v911, %v978
        %v985 = vadd.f32 %v912, %v979
        %v986 = vadd.f32 %v913, %v980
        %v987 = vadd.f32 %v914, %v981
        %988 = vset.pattern.permute.xlu0 7
        %989 = vperm.xlu0 %988, %v443
        %v990 = vpop.permute.xlu0 %989
        %992 = vset.pattern.permute.xlu0 7
        %993 = vperm.xlu0 %992, %v444
        %v994 = vpop.permute.xlu0 %993
        %996 = vset.pattern.permute.xlu0 7
        %997 = vperm.xlu0 %996, %v445
        %v998 = vpop.permute.xlu0 %997
        %v1000 = vmul.f32 %v473, %v990
        %v1001 = vmul.f32 %v474, %v990
        %v1002 = vmul.f32 %v475, %v990
        %v1003 = vmul.f32 %v476, %v994
        %v1004 = vmul.f32 %v477, %v994
        %v1005 = vmul.f32 %v478, %v994
        %v1006 = vmul.f32 %v479, %v998
        %v1007 = vmul.f32 %v480, %v998
        %v1008 = vmul.f32 %v481, %v998
        %1018 = vrot.lane.b32.xlu0 %v1000, 80
        %v1019 = vpop.permute.xlu0 %1018
        %1020 = vrot.lane.b32.xlu0 %v1001, 80
        %v1021 = vpop.permute.xlu0 %1020
        %1022 = vrot.lane.b32.xlu0 %v1002, 80
        %v1023 = vpop.permute.xlu0 %1022
        %1024 = vrot.lane.b32.xlu0 %v1003, 80
        %v1025 = vpop.permute.xlu0 %1024
        %1026 = vrot.lane.b32.xlu0 %v1004, 80
        %v1027 = vpop.permute.xlu0 %1026
        %1028 = vrot.lane.b32.xlu0 %v1005, 80
        %v1029 = vpop.permute.xlu0 %1028
        %1030 = vrot.lane.b32.xlu0 %v1006, 80
        %v1031 = vpop.permute.xlu0 %1030
        %1032 = vrot.lane.b32.xlu0 %v1007, 80
        %v1033 = vpop.permute.xlu0 %1032
        %1034 = vrot.lane.b32.xlu0 %v1008, 80
        %v1035 = vpop.permute.xlu0 %1034
        %vm1036 = vcmask 654336
        %v1037 = vsel %vm1036, %v1019, %v1021
        %v1038 = vsel %vm1036, %v1021, %v1023
        %v1039 = vsel %vm1036, %v1025, %v1027
        %v1040 = vsel %vm1036, %v1027, %v1029
        %v1041 = vsel %vm1036, %v1031, %v1033
        %v1042 = vsel %vm1036, %v1033, %v1035
        %v1049 = vadd.f32 %v982, %v1037
        %v1050 = vadd.f32 %v983, %v1038
        %v1051 = vadd.f32 %v984, %v1039
        %v1052 = vadd.f32 %v985, %v1040
        %v1053 = vadd.f32 %v986, %v1041
        %v1054 = vadd.f32 %v987, %v1042
        %1055 = vset.pattern.permute.xlu0 8
        %1056 = vperm.xlu0 %1055, %v443
        %v1057 = vpop.permute.xlu0 %1056
        %1059 = vset.pattern.permute.xlu0 8
        %1060 = vperm.xlu0 %1059, %v444
        %v1061 = vpop.permute.xlu0 %1060
        %1063 = vset.pattern.permute.xlu0 8
        %1064 = vperm.xlu0 %1063, %v445
        %v1065 = vpop.permute.xlu0 %1064
        %v1067 = vmul.f32 %v473, %v1057
        %v1068 = vmul.f32 %v474, %v1057
        %v1069 = vmul.f32 %v475, %v1057
        %v1070 = vmul.f32 %v476, %v1061
        %v1071 = vmul.f32 %v477, %v1061
        %v1072 = vmul.f32 %v478, %v1061
        %v1073 = vmul.f32 %v479, %v1065
        %v1074 = vmul.f32 %v480, %v1065
        %v1075 = vmul.f32 %v481, %v1065
        %1085 = vrot.lane.b32.xlu0 %v1067, 79
        %v1086 = vpop.permute.xlu0 %1085
        %1087 = vrot.lane.b32.xlu0 %v1068, 79
        %v1088 = vpop.permute.xlu0 %1087
        %1089 = vrot.lane.b32.xlu0 %v1069, 79
        %v1090 = vpop.permute.xlu0 %1089
        %1091 = vrot.lane.b32.xlu0 %v1070, 79
        %v1092 = vpop.permute.xlu0 %1091
        %1093 = vrot.lane.b32.xlu0 %v1071, 79
        %v1094 = vpop.permute.xlu0 %1093
        %1095 = vrot.lane.b32.xlu0 %v1072, 79
        %v1096 = vpop.permute.xlu0 %1095
        %1097 = vrot.lane.b32.xlu0 %v1073, 79
        %v1098 = vpop.permute.xlu0 %1097
        %1099 = vrot.lane.b32.xlu0 %v1074, 79
        %v1100 = vpop.permute.xlu0 %1099
        %1101 = vrot.lane.b32.xlu0 %v1075, 79
        %v1102 = vpop.permute.xlu0 %1101
        %vm1103 = vcmask 646144
        %v1104 = vsel %vm1103, %v1086, %v1088
        %v1105 = vsel %vm1103, %v1088, %v1090
        %v1106 = vsel %vm1103, %v1092, %v1094
        %v1107 = vsel %vm1103, %v1094, %v1096
        %v1108 = vsel %vm1103, %v1098, %v1100
        %v1109 = vsel %vm1103, %v1100, %v1102
        %v1116 = vsel %vm648, %v1104, 0.0
        %v1117 = vsel %vm649, %v1105, 0.0
        %v1118 = vsel %vm648, %v1106, 0.0
        %v1119 = vsel %vm649, %v1107, 0.0
        %v1120 = vsel %vm648, %v1108, 0.0
        %v1121 = vsel %vm649, %v1109, 0.0
        %v1122 = vadd.f32 %v1049, %v1116
        %v1123 = vadd.f32 %v1050, %v1117
        %v1124 = vadd.f32 %v1051, %v1118
        %v1125 = vadd.f32 %v1052, %v1119
        %v1126 = vadd.f32 %v1053, %v1120
        %v1127 = vadd.f32 %v1054, %v1121
        %1128 = vset.pattern.permute.xlu0 1
        %1129 = vperm.xlu0 %1128, %v252
        %v1130 = vpop.permute.xlu0 %1129
        %1132 = vset.pattern.permute.xlu0 1
        %1133 = vperm.xlu0 %1132, %v253
        %v1134 = vpop.permute.xlu0 %1133
        %1136 = vset.pattern.permute.xlu0 1
        %1137 = vperm.xlu0 %1136, %v254
        %v1138 = vpop.permute.xlu0 %1137
        %v1140 = vadd.f32 %v1122, %v1130
        %v1141 = vadd.f32 %v1123, %v1130
        %v1142 = vadd.f32 %v1124, %v1134
        %v1143 = vadd.f32 %v1125, %v1134
        %v1144 = vadd.f32 %v1126, %v1138
        %v1145 = vadd.f32 %v1127, %v1138
        %v1146 = vmax.f32 %v1140, 0.0
        %v1147 = vmax.f32 %v1141, 0.0
        %v1148 = vmax.f32 %v1142, 0.0
        %v1149 = vmax.f32 %v1143, 0.0
        %v1150 = vmax.f32 %v1144, 0.0
        %v1151 = vmax.f32 %v1145, 0.0
        %v1152 = vld [vmem:[%s3] sm:$0xf]
        %v1153 = vld [vmem:[%s3 + $0x4] sm:$0xf]
        %v1154 = vpack.c.bf16 %v1148, %v1146
        %v1155 = vpack.c.bf16 %v1149, %v1147
        %v1156 = vpack.c.bf16 %v1150, %v1150
        %v1157 = vpack.c.bf16 %v1151, %v1151
        %1158 = vset.pattern.permute.xlu0 2
        %1159 = vperm.xlu0 %1158, %v252
        %v1160 = vpop.permute.xlu0 %1159
        %1162 = vset.pattern.permute.xlu0 2
        %1163 = vperm.xlu0 %1162, %v253
        %v1164 = vpop.permute.xlu0 %1163
        %v1168 = vunpack.c.l.b16 %v1152
        %v1169 = vunpack.c.l.b16 %v1153
        %v1170 = vpack.c.b16 %v1169, %v1168
        %vm1171 = vcmask 195584
        %v1173 = vsel %vm1171, %v1170, 0
        %v1176 = vsel %vm288, %v1156, 0
        %v1179 = vsel %vm288, %v1157, 0
        %1181 = vmatprep.subr.bf16.mxu0 0
        %1182 = vmatpush1.bf16.msra.mxu0 0
        %1183 = vmatprep.subr.bf16.mxu0 0
        %1184 = vmatpush1.bf16.msra.mxu0 0
        %1185 = vmatprep.subr.bf16.mxu0 0
        %1186 = vmatpush1.bf16.msra.mxu0 0
        %1187 = vmatprep.subr.bf16.mxu0 0
        %1188 = vmatpush1.bf16.msra.mxu0 0
        %1189 = vmatprep.subr.bf16.mxu0 0
        %1190 = vmatpush1.bf16.msra.mxu0 0
        %1191 = vmatprep.subr.bf16.mxu0 0
        %1192 = vmatpush1.bf16.msra.mxu0 0
        %1193 = vmatprep.subr.bf16.mxu0 %v1179
        %1194 = vmatpush1.bf16.msra.mxu0 %v1176
        %1195 = vmatprep.subr.bf16.mxu0 %v1155
        %1196 = vmatpush1.bf16.msra.mxu0 %v1154
        %1197 = vmatprep.subr.bf16.mxu0 0
        %1198 = vmatpush2.bf16.msra.mxu0 0
        %1199 = vmatprep.subr.bf16.mxu0 0
        %1200 = vmatpush2.bf16.msra.mxu0 0
        %1201 = vmatprep.subr.bf16.mxu0 0
        %1202 = vmatpush2.bf16.msra.mxu0 0
        %1203 = vmatprep.subr.bf16.mxu0 0
        %1204 = vmatpush2.bf16.msra.mxu0 0
        %1205 = vmatprep.subr.bf16.mxu0 0
        %1206 = vmatpush2.bf16.msra.mxu0 0
        %1207 = vmatprep.subr.bf16.mxu0 0
        %1208 = vmatpush2.bf16.msra.mxu0 0
        %1209 = vmatprep.subr.bf16.mxu0 0
        %1210 = vmatpush2.bf16.msra.mxu0 0
        %1211 = vmatprep.subr.bf16.mxu0 0
        %1212 = vmatpush2.bf16.msra.mxu0 0
        %1213 = vmatprep.mubr.bf16.mxu0 0
        %1214 = vmatmul.mubr.bf16.gmra.mxu0 %v1173
        %v1215 = vpop.f32.mrf.mxu0
        %v1216 = vadd.f32 %v1160, %v1215
        %v1217 = vpop.f32.mrf.mxu0
        %v1218 = vadd.f32 %v1160, %v1217
        %v1219 = vpop.f32.mrf.mxu0
        %v1220 = vadd.f32 %v1164, %v1219
        %v1221 = vpop.f32.mrf.mxu0
        %v1222 = vadd.f32 %v1164, %v1221
        %1223 = vdwg.mxu0
        %v1224 = vld [vmem:[%s4] sm:$0xff]
        %v1225 = vld [vmem:[%s4 + $0x8] sm:$0xff]
        %v1226 = vld [vmem:[%s4 + $0x10] sm:$0x1]
        %v1227 = vadd.f32 %v1216, %v1218
        %1228 = vadd.xlane.f32.xlu0 %v1227
        %v1229 = vpop.xlane.xlu0 %1228
        %v1230 = vadd.f32 %v1220, %v1222
        %1231 = vadd.xlane.f32.xlu0 %v1230
        %v1232 = vpop.xlane.xlu0 %1231
        %v1233 = vrcp.pop 256.0
        %v1234 = vmul.f32 %v1229, %v1233
        %v1235 = vmul.f32 %v1232, %v1233
        %v1236 = vmul.f32 %v1224, %v1234
        %v1237 = vmul.f32 %v1225, %v1235
        %vm1238 = vcmask 31744
        %v1239 = vsel %vm1238, %v1236, 0.0
        %v1240 = vsel %vm1238, %v1237, 0.0
        %v1241 = vadd.f32 %v1239, %v1240
        %v1242 = vrot.slane %v1241, 4
        %v1243 = vadd.f32 %v1241, %v1242
        %v1244 = vrot.slane %v1243, 2
        %v1245 = vadd.f32 %v1243, %v1244
        %v1246 = vrot.slane %v1245, 1
        %v1247 = vadd.f32 %v1245, %v1246
        %v1248 = vadd.f32 %v1247, %v1226
        %v1249 = vmax.f32 %v1248, 0.0
        %v1250 = vlaneseq
        %v1251 = vshrl.u32 %v1250, 7
        %v1252 = vsub.s32 0, %v1251
        %v1253 = vrot.slane %v1249, %v1252
        %1255 = vrot.lane.b32.xlu0 %v1253, 4
        %v1256 = vpop.permute.xlu0 %1255
        %v1258 = vmul.f32 %v1224, %v1256
        %v1259 = vmul.f32 %v1225, %v1256
        %1262 = vrot.lane.b32.xlu0 %v1258, 124
        %v1263 = vpop.permute.xlu0 %1262
        %1264 = vrot.lane.b32.xlu0 %v1259, 124
        %v1265 = vpop.permute.xlu0 %1264
        %v1268 = vsel %vm1238, %v1263, 0.0
        %1269 = vadd.xlane.f32.xlu0 %v1268
        %v1270 = vpop.xlane.xlu0 %1269
        %v1271 = vsel %vm1238, %v1265, 0.0
        %1272 = vadd.xlane.f32.xlu0 %v1271
        %v1273 = vpop.xlane.xlu0 %1272
        %v1274 = vadd.f32 %v1270, %v252
        %v1275 = vadd.f32 %v1273, %v253
        %v1276 = vadd.f32 %v1274, 3.0
        %v1277 = vadd.f32 %v1275, 3.0
        %v1278 = vmax.f32 %v1276, 0.0
        %v1279 = vmax.f32 %v1277, 0.0
        %v1280 = vmin.f32 %v1278, 6.0
        %v1281 = vmin.f32 %v1279, 6.0
        %v1282 = vmul.f32 %v1280, 0.16666667
        %v1283 = vmul.f32 %v1281, 0.16666667
        %1285 = vset.pattern.permute.xlu0 4
        %1286 = vperm.xlu0 %1285, %v1282
        %v1287 = vpop.permute.xlu0 %1286
        %1290 = vset.pattern.permute.xlu0 4
        %1291 = vperm.xlu0 %1290, %v1283
        %v1292 = vpop.permute.xlu0 %1291
        %v1294 = vmul.f32 %v1216, %v1287
        %v1295 = vmul.f32 %v1218, %v1287
        %v1296 = vmul.f32 %v1220, %v1292
        %v1297 = vmul.f32 %v1222, %v1292
        %v1298 = vadd.f32 %v1294, %v391
        %v1299 = vadd.f32 %v1295, %v392
        %v1300 = vadd.f32 %v1296, %v393
        %v1301 = vadd.f32 %v1297, %v394
        %1302 = vst [vmem:[%s244] sm:$0xff] %v1298
        %1303 = vst [vmem:[%s244 + $0x8] sm:$0xff] %v1299
        %1304 = vst [vmem:[%s244 + $0x10] sm:$0xff] %v1300
        %1305 = vst [vmem:[%s244 + $0x18] sm:$0xff] %v1301
        %s1306 = sand.u32 %s159, 1
        %s1307 = scalar_lea.sflag [#allocation4], %s1306
        %s1308 = sand.u32 %s159, 1
        %s1309 = smul.addr %s1308, 32
        %s1310 = scalar_lea.vmem [#allocation3], %s1309
        // Predicated region
        $region45: #{tpu_custom_call.1} parent=43 // pred_check
          %p1311 = pneg %p169
        $region46: #{tpu_custom_call.1} parent=43 // pred_check_branch
          %1313 = sbr.rel (%p1311) target = $region48
        $region47: #{tpu_custom_call.1} parent=43 // pred_region
          %s1315 = ssub.s32 512, 512
          %1316 = vsyncadd %s1307, %s1315
          %s1317 = smul.addr %s20, 4
          %s1318 = smul.addr %s1317, 128
          %s1319 = scalar_lea.hbm %s6, %s1318
          %s1320 = sshll.u32 %s1310, 4
          %s1321 = int_to_ptr.vmem [resolvable:$true] %s1320
          %1326 = dma.vmem_to_hbm [thread:$0]  %s1321, 512, %s1319, %s1307, 256, 256, 16
        $region48: #{tpu_custom_call.1} parent=43 // pred_fallthru
          _
      $region44: #{tpu_custom_call.1} parent=5 // pred_fallthru
        _
      %p1327 = scmp.le.s32.totalorder 2, %s15
      // Predicated region
      $region49: #{tpu_custom_call.1} parent=5 // pred_check
        %p1328 = pneg %p1327
      $region50: #{tpu_custom_call.1} parent=5 // pred_check_branch
        %1330 = sbr.rel (%p1328) target = $region52
      $region51: #{tpu_custom_call.1} parent=5 // pred_region
        %s1331 = ssub.s32 %s15, 2
        // Predicated region
        $region53: #{tpu_custom_call.1} parent=51 // pred_check
          %p1332 = pneg %p175
        $region54: #{tpu_custom_call.1} parent=51 // pred_check_branch
          %1334 = sbr.rel (%p1332) target = $region56
        $region55: #{tpu_custom_call.1} parent=51 // pred_region
          %s1335 = sand.u32 %s160, 1
          %s1336 = scalar_lea.sflag [#allocation4], %s1335
          %s1337 = sand.u32 %s160, 1
          %s1338 = smul.addr %s1337, 32
          %s1339 = scalar_lea.vmem [#allocation3], %s1338
          %1340 = dma.done %s1336, 512
        $region56: #{tpu_custom_call.1} parent=51 // pred_fallthru
          _
      $region52: #{tpu_custom_call.1} parent=5 // pred_fallthru
        _
    $region6: #{tpu_custom_call.1} parent=1 // loop_footer
      %s19 = sadd.s32 1, %s15
    $region7: #{tpu_custom_call.1} parent=1 // loop_footer_branch
      %14 = sbr.rel target = $region3
    $region8: #{tpu_custom_call.1} parent=1 // loop_exit
      _
    %1341 = vsyncpa [#allocation4], 1
    %s1342 = scalar_lea.sflag [#allocation4], 1
    %1343 = vsyncpa %s1342, 1

</llo_original>
